<compile_context>
chip_gen: v5e
topology: v5e:2x2
jax: 0.10.0
libtpu: 0.0.40
codegen_flags: <defaults>
</compile_context>

<pallas_src>
import functools
import numpy as np
import jax
import jax.numpy as jnp
from jax.experimental import pallas as pl
from jax.experimental.pallas import tpu as pltpu


# ---------------------------------------------------------------------------
# Helpers
# ---------------------------------------------------------------------------

def _compute_pad(k, s, size):
    if size % s == 0:
        return max(k - s, 0)
    return max(k - size % s, 0)


def _bn_tile(m, cap=4096):
    if m <= cap:
        return m
    for t in range(cap - cap % 8, 7, -8):
        if m % t == 0:
            return t
    return cap  # ragged tail handled by Pallas block masking


# ---------------------------------------------------------------------------
# Pallas kernels
# ---------------------------------------------------------------------------

def _conv_stats_kernel(x_ref, w_ref, o_ref, sum_ref, sq_ref, *,
                       kt, kh, kw, st, Wp, out_w, m_rows):
    """One (n, out_t) grid step: full conv output plane + fused BN partial stats.

    x_ref  : (Tp, Hp*Wp + kw-1, Cin)   bf16  -- whole padded sample, resident over out_t
    w_ref  : (kt, kh*kw*Cin, Cout_p)   bf16  -- full weight, resident
    o_ref  : (m_rows, Cout_p)          f32   -- conv plane, m_rows = out_h * Wp
    sum_ref, sq_ref : (1, Cout_p)      f32   -- per-(n, out_t) channel sum / sum-sq
    """
    t0 = pl.program_id(1) * st

    acc = None
    for dt in range(kt):                              # static, small (<= 7)
        # Gather the kh*kw spatial taps of this T-slice into a lane-dense LHS of
        # shape (m_rows, kh*kw*Cin): each tap is a cheap sublane-offset slice of the
        # flattened plane ("shift trick", stride-1 spatial).
        taps = []
        for dh in range(kh):
            for dw in range(kw):
                off = dh * Wp + dw                    # static flat-row offset
                taps.append(x_ref[t0 + dt, pl.ds(off, m_rows), :])
        lhs = taps[0] if len(taps) == 1 else jnp.concatenate(taps, axis=-1)
        part = jnp.dot(lhs, w_ref[dt], preferred_element_type=jnp.float32)
        acc = part if acc is None else acc + part

    o_ref[...] = acc                                  # single bulk store per grid step

    # Fused BN statistics on the in-register result; mask the kw-1 garbage columns
    # introduced by the flattened-plane trick.
    if out_w == Wp:
        v = acc
    else:
        col = jax.lax.broadcasted_iota(jnp.int32, (m_rows, 1), 0) % Wp
        v = acc * (col < out_w).astype(jnp.float32)
    sum_ref[...] = jnp.sum(v, axis=0, keepdims=True)
    sq_ref[...] = jnp.sum(v * acc, axis=0, keepdims=True)   # masked sum of squares


def _bn_act_kernel(x_ref, scale_ref, shift_ref, o_ref, *, apply_relu):
    # Fused affine batch-norm + activation on lane-dense [tm, Cout_p] tiles.
    y = x_ref[...] * scale_ref[...] + shift_ref[...]
    if apply_relu:
        y = jnp.maximum(y, 0.0)
    o_ref[...] = y


# ---------------------------------------------------------------------------
# pallas_call wrappers
# ---------------------------------------------------------------------------

def _bn_act(x_flat, scale, shift, apply_relu):
    M, C = x_flat.shape
    tm = _bn_tile(M)
    return pl.pallas_call(
        functools.partial(_bn_act_kernel, apply_relu=apply_relu),
        out_shape=jax.ShapeDtypeStruct((M, C), jnp.float32),
        grid=(pl.cdiv(M, tm),),
        in_specs=[
            pl.BlockSpec((tm, C), lambda i: (i, 0)),
            pl.BlockSpec((1, C), lambda i: (0, 0)),
            pl.BlockSpec((1, C), lambda i: (0, 0)),
        ],
        out_specs=pl.BlockSpec((tm, C), lambda i: (i, 0)),
        input_output_aliases={0: 0},        # overwrite the conv buffer in place
        compiler_params=pltpu.CompilerParams(
            dimension_semantics=("parallel",),
            vmem_limit_bytes=32 * 1024 * 1024,
        ),
    )(x_flat, scale, shift)


# ---------------------------------------------------------------------------
# Unit3D forward
# ---------------------------------------------------------------------------

@functools.partial(jax.jit,
                   static_argnames=("kernel_shape", "stride",
                                    "use_batch_norm", "apply_relu"))
def unit3d_forward(x, weight, *, kernel_shape, stride=(1, 1, 1),
                   use_batch_norm=True, apply_relu=True,
                   gamma=None, beta=None, eps=1e-3):
    """x: [N, Cin, T, H, W] f32; weight: [Cout, Cin, kt, kh, kw] f32 (no bias)."""
    N, Cin, T, H, W = x.shape
    kt, kh, kw = kernel_shape
    st, sh, sw = stride
    Cout = weight.shape[0]

    if sh != 1 or sw != 1:
        # TODO(synk): spatial strides > 1 (only the I3D stem conv) are not implemented
        # in the Pallas path; temporal stride st is fully supported.
        raise NotImplementedError("Unit3D Pallas kernel: spatial stride > 1 not supported")

    out_t = -(-T // st)
    out_h = H
    out_w = W

    pad_t = _compute_pad(kt, st, T)
    pad_h = _compute_pad(kh, sh, H)
    pad_w = _compute_pad(kw, sw, W)
    pt_f, pt_b = pad_t // 2, pad_t - pad_t // 2
    ph_f, ph_b = pad_h // 2, pad_h - pad_h // 2
    pw_f, pw_b = pad_w // 2, pad_w - pad_w // 2

    Tp, Hp, Wp = T + pad_t, H + pad_h, W + pad_w
    Cout_p = ((Cout + 127) // 128) * 128          # lane-dense output channels
    K = kh * kw * Cin                             # folded contraction depth
    m_rows = out_h * Wp                           # matmul M per (n, out_t) plane
    hw_pad = Hp * Wp + (kw - 1)                   # extra rows keep the last tap in-bounds

    # Channels-last, (H,W)-flattened, bf16 input.  The raw Cin lane dim is narrow for
    # small Cin, but the in-kernel tap gather produces a lane-dense K = kh*kw*Cin
    # contraction for the MXU, and the whole sample is resident in VMEM across out_t.
    # TODO(synk): very large planes (e.g. 112x112 stems) need an out_h tiling axis.
    x_cl = jnp.transpose(x, (0, 2, 3, 4, 1))      # N, T, H, W, Cin
    x_cl = jnp.pad(x_cl, ((0, 0), (pt_f, pt_b), (ph_f, ph_b), (pw_f, pw_b), (0, 0)))
    x_flat = x_cl.reshape(N, Tp, Hp * Wp, Cin)
    x_flat = jnp.pad(x_flat, ((0, 0), (0, 0), (0, kw - 1), (0, 0))).astype(jnp.bfloat16)

    # Weight -> (kt, kh*kw*Cin, Cout_p) bf16; row order (dh, dw, cin) matches the gather.
    w = jnp.transpose(weight, (2, 3, 4, 1, 0)).reshape(kt, K, Cout)
    w = jnp.pad(w, ((0, 0), (0, 0), (0, Cout_p - Cout))).astype(jnp.bfloat16)

    # Single-buffer the resident weight only when it is large enough for the extra
    # pipeline buffer to matter (big layers on v7x's 64 MiB VMEM); tiny weights keep
    # the default double-buffering.
    w_spec_kwargs = {}
    if w.size * 2 > (2 << 20):
        w_spec_kwargs = dict(pipeline_mode=pl.Buffered(1))
    w_spec = pl.BlockSpec((kt, K, Cout_p), lambda n, ot: (0, 0, 0), **w_spec_kwargs)

    kern = functools.partial(_conv_stats_kernel, kt=kt, kh=kh, kw=kw, st=st,
                             Wp=Wp, out_w=out_w, m_rows=m_rows)
    conv, sums, sqs = pl.pallas_call(
        kern,
        grid=(N, out_t),
        in_specs=[
            # Whole padded sample; index_map depends only on n so the block stays
            # resident across out_t (no kt x HBM re-read).
            pl.BlockSpec((None, Tp, hw_pad, Cin), lambda n, ot: (n, 0, 0, 0)),
            w_spec,
        ],
        out_specs=(
            pl.BlockSpec((None, None, m_rows, Cout_p), lambda n, ot: (n, ot, 0, 0)),
            pl.BlockSpec((None, None, 1, Cout_p), lambda n, ot: (n, ot, 0, 0)),
            pl.BlockSpec((None, None, 1, Cout_p), lambda n, ot: (n, ot, 0, 0)),
        ),
        out_shape=(
            jax.ShapeDtypeStruct((N, out_t, m_rows, Cout_p), jnp.float32),
            jax.ShapeDtypeStruct((N, out_t, 1, Cout_p), jnp.float32),
            jax.ShapeDtypeStruct((N, out_t, 1, Cout_p), jnp.float32),
        ),
        compiler_params=pltpu.CompilerParams(
            # Per-(n, out_t) output & stats blocks -> both axes parallel (v7x megacore).
            dimension_semantics=("parallel", "parallel"),
            vmem_limit_bytes=48 * 1024 * 1024,
        ),
    )(x_flat, w)

    count = N * out_t * out_h * out_w
    if use_batch_norm:
        sum_c = jnp.sum(sums[:, :, 0, :], axis=(0, 1))
        sq_c = jnp.sum(sqs[:, :, 0, :], axis=(0, 1))
        mean = sum_c / count
        # TODO(synk): single-pass E[x^2]-E[x]^2 can cancel for |mean| >> std; switch to
        # shifted accumulation if that regime matters for a given layer.
        var = jnp.maximum(sq_c / count - mean * mean, 0.0)
        g = jnp.ones((Cout,), jnp.float32) if gamma is None else gamma.astype(jnp.float32)
        b = jnp.zeros((Cout,), jnp.float32) if beta is None else beta.astype(jnp.float32)
        g = jnp.pad(g, (0, Cout_p - Cout), constant_values=1.0)
        b = jnp.pad(b, (0, Cout_p - Cout))
        scale = g * jax.lax.rsqrt(var + eps)
        shift = b - mean * scale
    else:
        scale = jnp.ones((Cout_p,), jnp.float32)
        shift = jnp.zeros((Cout_p,), jnp.float32)
    # TODO(synk): BatchNorm running-stat momentum updates and the optional conv bias
    # (module default use_bias=False) are not modeled; they do not affect this output.

    m_flat = N * out_t * m_rows
    y_flat = _bn_act(conv.reshape(m_flat, Cout_p),
                     scale.reshape(1, Cout_p), shift.reshape(1, Cout_p), apply_relu)

    # TODO(synk): the trailing slice + NCDHW transpose stay in XLA; fuse into the
    # epilogue (channels-first tiles) if this memory-bound tail dominates on v5e.
    y = y_flat.reshape(N, out_t, out_h, Wp, Cout_p)[:, :, :, :out_w, :Cout]
    return jnp.transpose(y, (0, 4, 1, 2, 3))           # back to NCDHW


# ---------------------------------------------------------------------------
# Pure-JAX reference (bf16 conv inputs, f32 accumulation, mirroring the kernel)
# ---------------------------------------------------------------------------

def reference_forward(x, weight, kernel_shape, stride, eps=1e-3):
    kt, kh, kw = kernel_shape
    _, _, T, H, W = x.shape
    pad_t = _compute_pad(kt, stride[0], T)
    pad_h = _compute_pad(kh, stride[1], H)
    pad_w = _compute_pad(kw, stride[2], W)
    pads = ((pad_t // 2, pad_t - pad_t // 2),
            (pad_h // 2, pad_h - pad_h // 2),
            (pad_w // 2, pad_w - pad_w // 2))
    y = jax.lax.conv_general_dilated(
        x.astype(jnp.bfloat16), weight.astype(jnp.bfloat16),
        window_strides=stride, padding=pads,
        dimension_numbers=("NCDHW", "OIDHW", "NCDHW"),
        preferred_element_type=jnp.float32)
    mean = jnp.mean(y, axis=(0, 2, 3, 4), keepdims=True)
    var = jnp.mean((y - mean) ** 2, axis=(0, 2, 3, 4), keepdims=True)
    y = (y - mean) / jnp.sqrt(var + eps)
    return jnp.maximum(y, 0.0)


if __name__ == "__main__":
    key = jax.random.PRNGKey(0)
    kx, kw_key = jax.random.split(key)

    N, Cin, T, H, W = 2, 4, 4, 8, 8
    Cout = 8
    kernel_shape = (3, 3, 3)
    stride = (1, 1, 1)

    x = jax.random.normal(kx, (N, Cin, T, H, W), jnp.float32)
    weight = 0.1 * jax.random.normal(kw_key, (Cout, Cin) + kernel_shape, jnp.float32)

    out = unit3d_forward(x, weight, kernel_shape=kernel_shape, stride=stride)
    out = jax.block_until_ready(out)

    ref = reference_forward(x, weight, kernel_shape, stride)
    assert out.shape == ref.shape, (out.shape, ref.shape)
    np.testing.assert_allclose(np.asarray(out), np.asarray(ref), atol=2e-3, rtol=2e-3)

    print("KERNEL_OK")
</pallas_src>

<mosaic_0001>
module attributes {stable_mosaic.version = 11 : i64} {
  func.func @_conv_stats_kernel(%arg0: i32, %arg1: i32, %arg2: memref<1x6x102x4xbf16, #tpu.memory_space<vmem>>, %arg3: memref<3x36x128xbf16, #tpu.memory_space<vmem>>, %arg4: memref<1x1x80x128xf32, #tpu.memory_space<vmem>>, %arg5: memref<1x1x1x128xf32, #tpu.memory_space<vmem>>, %arg6: memref<1x1x1x128xf32, #tpu.memory_space<vmem>>) attributes {dimension_semantics = [#tpu.dimension_semantics<parallel>, #tpu.dimension_semantics<parallel>], iteration_bounds = array<i64: 2, 4>, scalar_prefetch = 0 : i64, scratch_operands = 0 : i64, tpu.core_type = #tpu.core_type<tc>, window_params = [{transform_indices = @transform_0, window_bounds = array<i64: 1, 6, 102, 4>}, {pipeline_mode = #tpu.pipeline_mode<synchronous>, transform_indices = @transform_1, window_bounds = array<i64: 3, 36, 128>}, {transform_indices = @transform_2, window_bounds = array<i64: 1, 1, 80, 128>}, {transform_indices = @transform_3, window_bounds = array<i64: 1, 1, 1, 128>}, {transform_indices = @transform_4, window_bounds = array<i64: 1, 1, 1, 128>}]} {
    %c1_i32 = arith.constant 1 : i32
    %0 = arith.muli %arg1, %c1_i32 : i32
    %c0_i32 = arith.constant 0 : i32
    %1 = arith.addi %0, %c0_i32 : i32
    %c0 = arith.constant 0 : index
    %2 = arith.index_cast %1 : i32 to index
    %c0_0 = arith.constant 0 : index
    %c0_1 = arith.constant 0 : index
    %3 = vector.load %arg2[%c0, %2, %c0_0, %c0_1] : memref<1x6x102x4xbf16, #tpu.memory_space<vmem>>, vector<1x1x80x4xbf16>
    %4 = vector.shape_cast %3 : vector<1x1x80x4xbf16> to vector<80x4xbf16>
    %c0_i32_2 = arith.constant 0 : i32
    %5 = arith.addi %0, %c0_i32_2 : i32
    %c0_3 = arith.constant 0 : index
    %6 = arith.index_cast %5 : i32 to index
    %c1 = arith.constant 1 : index
    %c0_4 = arith.constant 0 : index
    %7 = vector.load %arg2[%c0_3, %6, %c1, %c0_4] : memref<1x6x102x4xbf16, #tpu.memory_space<vmem>>, vector<1x1x80x4xbf16>
    %8 = vector.shape_cast %7 : vector<1x1x80x4xbf16> to vector<80x4xbf16>
    %c0_i32_5 = arith.constant 0 : i32
    %9 = arith.addi %0, %c0_i32_5 : i32
    %c0_6 = arith.constant 0 : index
    %10 = arith.index_cast %9 : i32 to index
    %c2 = arith.constant 2 : index
    %c0_7 = arith.constant 0 : index
    %11 = vector.load %arg2[%c0_6, %10, %c2, %c0_7] : memref<1x6x102x4xbf16, #tpu.memory_space<vmem>>, vector<1x1x80x4xbf16>
    %12 = vector.shape_cast %11 : vector<1x1x80x4xbf16> to vector<80x4xbf16>
    %c0_i32_8 = arith.constant 0 : i32
    %13 = arith.addi %0, %c0_i32_8 : i32
    %c0_9 = arith.constant 0 : index
    %14 = arith.index_cast %13 : i32 to index
    %c10 = arith.constant 10 : index
    %c0_10 = arith.constant 0 : index
    %15 = vector.load %arg2[%c0_9, %14, %c10, %c0_10] : memref<1x6x102x4xbf16, #tpu.memory_space<vmem>>, vector<1x1x80x4xbf16>
    %16 = vector.shape_cast %15 : vector<1x1x80x4xbf16> to vector<80x4xbf16>
    %c0_i32_11 = arith.constant 0 : i32
    %17 = arith.addi %0, %c0_i32_11 : i32
    %c0_12 = arith.constant 0 : index
    %18 = arith.index_cast %17 : i32 to index
    %c11 = arith.constant 11 : index
    %c0_13 = arith.constant 0 : index
    %19 = vector.load %arg2[%c0_12, %18, %c11, %c0_13] : memref<1x6x102x4xbf16, #tpu.memory_space<vmem>>, vector<1x1x80x4xbf16>
    %20 = vector.shape_cast %19 : vector<1x1x80x4xbf16> to vector<80x4xbf16>
    %c0_i32_14 = arith.constant 0 : i32
    %21 = arith.addi %0, %c0_i32_14 : i32
    %c0_15 = arith.constant 0 : index
    %22 = arith.index_cast %21 : i32 to index
    %c12 = arith.constant 12 : index
    %c0_16 = arith.constant 0 : index
    %23 = vector.load %arg2[%c0_15, %22, %c12, %c0_16] : memref<1x6x102x4xbf16, #tpu.memory_space<vmem>>, vector<1x1x80x4xbf16>
    %24 = vector.shape_cast %23 : vector<1x1x80x4xbf16> to vector<80x4xbf16>
    %c0_i32_17 = arith.constant 0 : i32
    %25 = arith.addi %0, %c0_i32_17 : i32
    %c0_18 = arith.constant 0 : index
    %26 = arith.index_cast %25 : i32 to index
    %c20 = arith.constant 20 : index
    %c0_19 = arith.constant 0 : index
    %27 = vector.load %arg2[%c0_18, %26, %c20, %c0_19] : memref<1x6x102x4xbf16, #tpu.memory_space<vmem>>, vector<1x1x80x4xbf16>
    %28 = vector.shape_cast %27 : vector<1x1x80x4xbf16> to vector<80x4xbf16>
    %c0_i32_20 = arith.constant 0 : i32
    %29 = arith.addi %0, %c0_i32_20 : i32
    %c0_21 = arith.constant 0 : index
    %30 = arith.index_cast %29 : i32 to index
    %c21 = arith.constant 21 : index
    %c0_22 = arith.constant 0 : index
    %31 = vector.load %arg2[%c0_21, %30, %c21, %c0_22] : memref<1x6x102x4xbf16, #tpu.memory_space<vmem>>, vector<1x1x80x4xbf16>
    %32 = vector.shape_cast %31 : vector<1x1x80x4xbf16> to vector<80x4xbf16>
    %c0_i32_23 = arith.constant 0 : i32
    %33 = arith.addi %0, %c0_i32_23 : i32
    %c0_24 = arith.constant 0 : index
    %34 = arith.index_cast %33 : i32 to index
    %c22 = arith.constant 22 : index
    %c0_25 = arith.constant 0 : index
    %35 = vector.load %arg2[%c0_24, %34, %c22, %c0_25] : memref<1x6x102x4xbf16, #tpu.memory_space<vmem>>, vector<1x1x80x4xbf16>
    %36 = vector.shape_cast %35 : vector<1x1x80x4xbf16> to vector<80x4xbf16>
    %37 = tpu.concatenate %4, %8, %12, %16, %20, %24, %28, %32, %36 in 1 : vector<80x4xbf16>, vector<80x4xbf16>, vector<80x4xbf16>, vector<80x4xbf16>, vector<80x4xbf16>, vector<80x4xbf16>, vector<80x4xbf16>, vector<80x4xbf16>, vector<80x4xbf16> -> vector<80x36xbf16>
    %c0_26 = arith.constant 0 : index
    %c0_27 = arith.constant 0 : index
    %c0_28 = arith.constant 0 : index
    %38 = vector.load %arg3[%c0_26, %c0_27, %c0_28] : memref<3x36x128xbf16, #tpu.memory_space<vmem>>, vector<1x36x128xbf16>
    %39 = vector.shape_cast %38 : vector<1x36x128xbf16> to vector<36x128xbf16>
    %cst = arith.constant dense<0.000000e+00> : vector<80x128xf32>
    %40 = tpu.matmul %37, %39, %cst {dimension_numbers = #tpu.dot_dimension_numbers<[1], [0], [0], [1], [0, 0, 1, 1], [], []>} : vector<80x36xbf16>, vector<36x128xbf16>, vector<80x128xf32> -> vector<80x128xf32>
    %c1_i32_29 = arith.constant 1 : i32
    %41 = arith.addi %0, %c1_i32_29 : i32
    %c0_30 = arith.constant 0 : index
    %42 = arith.index_cast %41 : i32 to index
    %c0_31 = arith.constant 0 : index
    %c0_32 = arith.constant 0 : index
    %43 = vector.load %arg2[%c0_30, %42, %c0_31, %c0_32] : memref<1x6x102x4xbf16, #tpu.memory_space<vmem>>, vector<1x1x80x4xbf16>
    %44 = vector.shape_cast %43 : vector<1x1x80x4xbf16> to vector<80x4xbf16>
    %c1_i32_33 = arith.constant 1 : i32
    %45 = arith.addi %0, %c1_i32_33 : i32
    %c0_34 = arith.constant 0 : index
    %46 = arith.index_cast %45 : i32 to index
    %c1_35 = arith.constant 1 : index
    %c0_36 = arith.constant 0 : index
    %47 = vector.load %arg2[%c0_34, %46, %c1_35, %c0_36] : memref<1x6x102x4xbf16, #tpu.memory_space<vmem>>, vector<1x1x80x4xbf16>
    %48 = vector.shape_cast %47 : vector<1x1x80x4xbf16> to vector<80x4xbf16>
    %c1_i32_37 = arith.constant 1 : i32
    %49 = arith.addi %0, %c1_i32_37 : i32
    %c0_38 = arith.constant 0 : index
    %50 = arith.index_cast %49 : i32 to index
    %c2_39 = arith.constant 2 : index
    %c0_40 = arith.constant 0 : index
    %51 = vector.load %arg2[%c0_38, %50, %c2_39, %c0_40] : memref<1x6x102x4xbf16, #tpu.memory_space<vmem>>, vector<1x1x80x4xbf16>
    %52 = vector.shape_cast %51 : vector<1x1x80x4xbf16> to vector<80x4xbf16>
    %c1_i32_41 = arith.constant 1 : i32
    %53 = arith.addi %0, %c1_i32_41 : i32
    %c0_42 = arith.constant 0 : index
    %54 = arith.index_cast %53 : i32 to index
    %c10_43 = arith.constant 10 : index
    %c0_44 = arith.constant 0 : index
    %55 = vector.load %arg2[%c0_42, %54, %c10_43, %c0_44] : memref<1x6x102x4xbf16, #tpu.memory_space<vmem>>, vector<1x1x80x4xbf16>
    %56 = vector.shape_cast %55 : vector<1x1x80x4xbf16> to vector<80x4xbf16>
    %c1_i32_45 = arith.constant 1 : i32
    %57 = arith.addi %0, %c1_i32_45 : i32
    %c0_46 = arith.constant 0 : index
    %58 = arith.index_cast %57 : i32 to index
    %c11_47 = arith.constant 11 : index
    %c0_48 = arith.constant 0 : index
    %59 = vector.load %arg2[%c0_46, %58, %c11_47, %c0_48] : memref<1x6x102x4xbf16, #tpu.memory_space<vmem>>, vector<1x1x80x4xbf16>
    %60 = vector.shape_cast %59 : vector<1x1x80x4xbf16> to vector<80x4xbf16>
    %c1_i32_49 = arith.constant 1 : i32
    %61 = arith.addi %0, %c1_i32_49 : i32
    %c0_50 = arith.constant 0 : index
    %62 = arith.index_cast %61 : i32 to index
    %c12_51 = arith.constant 12 : index
    %c0_52 = arith.constant 0 : index
    %63 = vector.load %arg2[%c0_50, %62, %c12_51, %c0_52] : memref<1x6x102x4xbf16, #tpu.memory_space<vmem>>, vector<1x1x80x4xbf16>
    %64 = vector.shape_cast %63 : vector<1x1x80x4xbf16> to vector<80x4xbf16>
    %c1_i32_53 = arith.constant 1 : i32
    %65 = arith.addi %0, %c1_i32_53 : i32
    %c0_54 = arith.constant 0 : index
    %66 = arith.index_cast %65 : i32 to index
    %c20_55 = arith.constant 20 : index
    %c0_56 = arith.constant 0 : index
    %67 = vector.load %arg2[%c0_54, %66, %c20_55, %c0_56] : memref<1x6x102x4xbf16, #tpu.memory_space<vmem>>, vector<1x1x80x4xbf16>
    %68 = vector.shape_cast %67 : vector<1x1x80x4xbf16> to vector<80x4xbf16>
    %c1_i32_57 = arith.constant 1 : i32
    %69 = arith.addi %0, %c1_i32_57 : i32
    %c0_58 = arith.constant 0 : index
    %70 = arith.index_cast %69 : i32 to index
    %c21_59 = arith.constant 21 : index
    %c0_60 = arith.constant 0 : index
    %71 = vector.load %arg2[%c0_58, %70, %c21_59, %c0_60] : memref<1x6x102x4xbf16, #tpu.memory_space<vmem>>, vector<1x1x80x4xbf16>
    %72 = vector.shape_cast %71 : vector<1x1x80x4xbf16> to vector<80x4xbf16>
    %c1_i32_61 = arith.constant 1 : i32
    %73 = arith.addi %0, %c1_i32_61 : i32
    %c0_62 = arith.constant 0 : index
    %74 = arith.index_cast %73 : i32 to index
    %c22_63 = arith.constant 22 : index
    %c0_64 = arith.constant 0 : index
    %75 = vector.load %arg2[%c0_62, %74, %c22_63, %c0_64] : memref<1x6x102x4xbf16, #tpu.memory_space<vmem>>, vector<1x1x80x4xbf16>
    %76 = vector.shape_cast %75 : vector<1x1x80x4xbf16> to vector<80x4xbf16>
    %77 = tpu.concatenate %44, %48, %52, %56, %60, %64, %68, %72, %76 in 1 : vector<80x4xbf16>, vector<80x4xbf16>, vector<80x4xbf16>, vector<80x4xbf16>, vector<80x4xbf16>, vector<80x4xbf16>, vector<80x4xbf16>, vector<80x4xbf16>, vector<80x4xbf16> -> vector<80x36xbf16>
    %c1_65 = arith.constant 1 : index
    %c0_66 = arith.constant 0 : index
    %c0_67 = arith.constant 0 : index
    %78 = vector.load %arg3[%c1_65, %c0_66, %c0_67] : memref<3x36x128xbf16, #tpu.memory_space<vmem>>, vector<1x36x128xbf16>
    %79 = vector.shape_cast %78 : vector<1x36x128xbf16> to vector<36x128xbf16>
    %cst_68 = arith.constant dense<0.000000e+00> : vector<80x128xf32>
    %80 = tpu.matmul %77, %79, %cst_68 {dimension_numbers = #tpu.dot_dimension_numbers<[1], [0], [0], [1], [0, 0, 1, 1], [], []>} : vector<80x36xbf16>, vector<36x128xbf16>, vector<80x128xf32> -> vector<80x128xf32>
    %81 = arith.addf %40, %80 : vector<80x128xf32>
    %c2_i32 = arith.constant 2 : i32
    %82 = arith.addi %0, %c2_i32 : i32
    %c0_69 = arith.constant 0 : index
    %83 = arith.index_cast %82 : i32 to index
    %c0_70 = arith.constant 0 : index
    %c0_71 = arith.constant 0 : index
    %84 = vector.load %arg2[%c0_69, %83, %c0_70, %c0_71] : memref<1x6x102x4xbf16, #tpu.memory_space<vmem>>, vector<1x1x80x4xbf16>
    %85 = vector.shape_cast %84 : vector<1x1x80x4xbf16> to vector<80x4xbf16>
    %c2_i32_72 = arith.constant 2 : i32
    %86 = arith.addi %0, %c2_i32_72 : i32
    %c0_73 = arith.constant 0 : index
    %87 = arith.index_cast %86 : i32 to index
    %c1_74 = arith.constant 1 : index
    %c0_75 = arith.constant 0 : index
    %88 = vector.load %arg2[%c0_73, %87, %c1_74, %c0_75] : memref<1x6x102x4xbf16, #tpu.memory_space<vmem>>, vector<1x1x80x4xbf16>
    %89 = vector.shape_cast %88 : vector<1x1x80x4xbf16> to vector<80x4xbf16>
    %c2_i32_76 = arith.constant 2 : i32
    %90 = arith.addi %0, %c2_i32_76 : i32
    %c0_77 = arith.constant 0 : index
    %91 = arith.index_cast %90 : i32 to index
    %c2_78 = arith.constant 2 : index
    %c0_79 = arith.constant 0 : index
    %92 = vector.load %arg2[%c0_77, %91, %c2_78, %c0_79] : memref<1x6x102x4xbf16, #tpu.memory_space<vmem>>, vector<1x1x80x4xbf16>
    %93 = vector.shape_cast %92 : vector<1x1x80x4xbf16> to vector<80x4xbf16>
    %c2_i32_80 = arith.constant 2 : i32
    %94 = arith.addi %0, %c2_i32_80 : i32
    %c0_81 = arith.constant 0 : index
    %95 = arith.index_cast %94 : i32 to index
    %c10_82 = arith.constant 10 : index
    %c0_83 = arith.constant 0 : index
    %96 = vector.load %arg2[%c0_81, %95, %c10_82, %c0_83] : memref<1x6x102x4xbf16, #tpu.memory_space<vmem>>, vector<1x1x80x4xbf16>
    %97 = vector.shape_cast %96 : vector<1x1x80x4xbf16> to vector<80x4xbf16>
    %c2_i32_84 = arith.constant 2 : i32
    %98 = arith.addi %0, %c2_i32_84 : i32
    %c0_85 = arith.constant 0 : index
    %99 = arith.index_cast %98 : i32 to index
    %c11_86 = arith.constant 11 : index
    %c0_87 = arith.constant 0 : index
    %100 = vector.load %arg2[%c0_85, %99, %c11_86, %c0_87] : memref<1x6x102x4xbf16, #tpu.memory_space<vmem>>, vector<1x1x80x4xbf16>
    %101 = vector.shape_cast %100 : vector<1x1x80x4xbf16> to vector<80x4xbf16>
    %c2_i32_88 = arith.constant 2 : i32
    %102 = arith.addi %0, %c2_i32_88 : i32
    %c0_89 = arith.constant 0 : index
    %103 = arith.index_cast %102 : i32 to index
    %c12_90 = arith.constant 12 : index
    %c0_91 = arith.constant 0 : index
    %104 = vector.load %arg2[%c0_89, %103, %c12_90, %c0_91] : memref<1x6x102x4xbf16, #tpu.memory_space<vmem>>, vector<1x1x80x4xbf16>
    %105 = vector.shape_cast %104 : vector<1x1x80x4xbf16> to vector<80x4xbf16>
    %c2_i32_92 = arith.constant 2 : i32
    %106 = arith.addi %0, %c2_i32_92 : i32
    %c0_93 = arith.constant 0 : index
    %107 = arith.index_cast %106 : i32 to index
    %c20_94 = arith.constant 20 : index
    %c0_95 = arith.constant 0 : index
    %108 = vector.load %arg2[%c0_93, %107, %c20_94, %c0_95] : memref<1x6x102x4xbf16, #tpu.memory_space<vmem>>, vector<1x1x80x4xbf16>
    %109 = vector.shape_cast %108 : vector<1x1x80x4xbf16> to vector<80x4xbf16>
    %c2_i32_96 = arith.constant 2 : i32
    %110 = arith.addi %0, %c2_i32_96 : i32
    %c0_97 = arith.constant 0 : index
    %111 = arith.index_cast %110 : i32 to index
    %c21_98 = arith.constant 21 : index
    %c0_99 = arith.constant 0 : index
    %112 = vector.load %arg2[%c0_97, %111, %c21_98, %c0_99] : memref<1x6x102x4xbf16, #tpu.memory_space<vmem>>, vector<1x1x80x4xbf16>
    %113 = vector.shape_cast %112 : vector<1x1x80x4xbf16> to vector<80x4xbf16>
    %c2_i32_100 = arith.constant 2 : i32
    %114 = arith.addi %0, %c2_i32_100 : i32
    %c0_101 = arith.constant 0 : index
    %115 = arith.index_cast %114 : i32 to index
    %c22_102 = arith.constant 22 : index
    %c0_103 = arith.constant 0 : index
    %116 = vector.load %arg2[%c0_101, %115, %c22_102, %c0_103] : memref<1x6x102x4xbf16, #tpu.memory_space<vmem>>, vector<1x1x80x4xbf16>
    %117 = vector.shape_cast %116 : vector<1x1x80x4xbf16> to vector<80x4xbf16>
    %118 = tpu.concatenate %85, %89, %93, %97, %101, %105, %109, %113, %117 in 1 : vector<80x4xbf16>, vector<80x4xbf16>, vector<80x4xbf16>, vector<80x4xbf16>, vector<80x4xbf16>, vector<80x4xbf16>, vector<80x4xbf16>, vector<80x4xbf16>, vector<80x4xbf16> -> vector<80x36xbf16>
    %c2_104 = arith.constant 2 : index
    %c0_105 = arith.constant 0 : index
    %c0_106 = arith.constant 0 : index
    %119 = vector.load %arg3[%c2_104, %c0_105, %c0_106] : memref<3x36x128xbf16, #tpu.memory_space<vmem>>, vector<1x36x128xbf16>
    %120 = vector.shape_cast %119 : vector<1x36x128xbf16> to vector<36x128xbf16>
    %cst_107 = arith.constant dense<0.000000e+00> : vector<80x128xf32>
    %121 = tpu.matmul %118, %120, %cst_107 {dimension_numbers = #tpu.dot_dimension_numbers<[1], [0], [0], [1], [0, 0, 1, 1], [], []>} : vector<80x36xbf16>, vector<36x128xbf16>, vector<80x128xf32> -> vector<80x128xf32>
    %122 = arith.addf %81, %121 : vector<80x128xf32>
    %c0_108 = arith.constant 0 : index
    %c0_109 = arith.constant 0 : index
    %c0_110 = arith.constant 0 : index
    %c0_111 = arith.constant 0 : index
    %123 = vector.load %arg4[%c0_108, %c0_109, %c0_110, %c0_111] : memref<1x1x80x128xf32, #tpu.memory_space<vmem>>, vector<1x1x80x128xf32>
    %124 = vector.shape_cast %123 : vector<1x1x80x128xf32> to vector<80x128xf32>
    %125 = vector.shape_cast %122 : vector<80x128xf32> to vector<1x1x80x128xf32>
    tpu.vector_store %arg4[%c0_108, %c0_109, %c0_110, %c0_111], %125 {strides = array<i32>} : memref<1x1x80x128xf32, #tpu.memory_space<vmem>>, vector<1x1x80x128xf32>,
    %126 = tpu.iota {dimensions = array<i32: 0>} : vector<80x1xi32>
    %c10_i32 = arith.constant 10 : i32
    %c0_i32_112 = arith.constant 0 : i32
    %127 = arith.cmpi eq, %c10_i32, %c0_i32_112 : i32
    %c1_i32_113 = arith.constant 1 : i32
    %128 = arith.select %127, %c1_i32_113, %c10_i32 : i32
    %129 = vector.broadcast %128 : i32 to vector<80x1xi32>
    %130 = arith.remsi %126, %129 : vector<80x1xi32>
    %c0_i32_114 = arith.constant 0 : i32
    %131 = vector.broadcast %c0_i32_114 : i32 to vector<80x1xi32>
    %132 = arith.cmpi ne, %130, %131 : vector<80x1xi32>
    %c0_i32_115 = arith.constant 0 : i32
    %133 = vector.broadcast %c0_i32_115 : i32 to vector<80x1xi32>
    %134 = arith.cmpi slt, %130, %133 : vector<80x1xi32>
    %c0_i32_116 = arith.constant 0 : i32
    %135 = arith.cmpi slt, %128, %c0_i32_116 : i32
    %136 = vector.broadcast %135 : i1 to vector<80x1xi1>
    %137 = vector.broadcast %136 : vector<80x1xi1> to vector<80x1xi1>
    %138 = arith.xori %134, %137 : vector<80x1xi1>
    %139 = arith.andi %138, %132 : vector<80x1xi1>
    %140 = vector.broadcast %128 : i32 to vector<80x1xi32>
    %141 = arith.addi %130, %140 : vector<80x1xi32>
    %142 = arith.select %139, %141, %130 : vector<80x1xi1>, vector<80x1xi32>
    %c8_i32 = arith.constant 8 : i32
    %143 = vector.broadcast %c8_i32 : i32 to vector<80x1xi32>
    %144 = arith.cmpi slt, %142, %143 : vector<80x1xi32>
    %145 = arith.extui %144 : vector<80x1xi1> to vector<80x1xi32>
    %146 = arith.sitofp %145 : vector<80x1xi32> to vector<80x1xf32>
    %147 = vector.broadcast %146 : vector<80x1xf32> to vector<80x128xf32>
    %148 = arith.mulf %122, %147 : vector<80x128xf32>
    %cst_117 = arith.constant dense<0.000000e+00> : vector<128xf32>
    %149 = vector.multi_reduction <add>, %148, %cst_117 [0] : vector<80x128xf32> to vector<128xf32>
    %150 = vector.shape_cast %149 : vector<128xf32> to vector<1x128xf32>
    %c0_118 = arith.constant 0 : index
    %c0_119 = arith.constant 0 : index
    %c0_120 = arith.constant 0 : index
    %c0_121 = arith.constant 0 : index
    %151 = vector.load %arg5[%c0_118, %c0_119, %c0_120, %c0_121] : memref<1x1x1x128xf32, #tpu.memory_space<vmem>>, vector<1x1x1x128xf32>
    %152 = vector.shape_cast %151 : vector<1x1x1x128xf32> to vector<1x128xf32>
    %153 = vector.shape_cast %150 : vector<1x128xf32> to vector<1x1x1x128xf32>
    tpu.vector_store %arg5[%c0_118, %c0_119, %c0_120, %c0_121], %153 {strides = array<i32>} : memref<1x1x1x128xf32, #tpu.memory_space<vmem>>, vector<1x1x1x128xf32>,
    %154 = arith.mulf %148, %122 : vector<80x128xf32>
    %cst_122 = arith.constant dense<0.000000e+00> : vector<128xf32>
    %155 = vector.multi_reduction <add>, %154, %cst_122 [0] : vector<80x128xf32> to vector<128xf32>
    %156 = vector.shape_cast %155 : vector<128xf32> to vector<1x128xf32>
    %c0_123 = arith.constant 0 : index
    %c0_124 = arith.constant 0 : index
    %c0_125 = arith.constant 0 : index
    %c0_126 = arith.constant 0 : index
    %157 = vector.load %arg6[%c0_123, %c0_124, %c0_125, %c0_126] : memref<1x1x1x128xf32, #tpu.memory_space<vmem>>, vector<1x1x1x128xf32>
    %158 = vector.shape_cast %157 : vector<1x1x1x128xf32> to vector<1x128xf32>
    %159 = vector.shape_cast %156 : vector<1x128xf32> to vector<1x1x1x128xf32>
    tpu.vector_store %arg6[%c0_123, %c0_124, %c0_125, %c0_126], %159 {strides = array<i32>} : memref<1x1x1x128xf32, #tpu.memory_space<vmem>>, vector<1x1x1x128xf32>,
    return
  }
  func.func @transform_0(%arg0: i32, %arg1: i32) -> (i32, i32, i32, i32) {
    %c0_i32 = arith.constant 0 : i32
    %c0_i32_0 = arith.constant 0 : i32
    %c0_i32_1 = arith.constant 0 : i32
    %c0_i32_2 = arith.constant 0 : i32
    return %arg0, %c0_i32, %c0_i32_0, %c0_i32_1 : i32, i32, i32, i32
  }
  func.func @transform_1(%arg0: i32, %arg1: i32) -> (i32, i32, i32) {
    %c0_i32 = arith.constant 0 : i32
    %c0_i32_0 = arith.constant 0 : i32
    %c0_i32_1 = arith.constant 0 : i32
    %c0_i32_2 = arith.constant 0 : i32
    return %c0_i32, %c0_i32_0, %c0_i32_1 : i32, i32, i32
  }
  func.func @transform_2(%arg0: i32, %arg1: i32) -> (i32, i32, i32, i32) {
    %c0_i32 = arith.constant 0 : i32
    %c0_i32_0 = arith.constant 0 : i32
    %c0_i32_1 = arith.constant 0 : i32
    return %arg0, %arg1, %c0_i32, %c0_i32_0 : i32, i32, i32, i32
  }
  func.func @transform_3(%arg0: i32, %arg1: i32) -> (i32, i32, i32, i32) {
    %c0_i32 = arith.constant 0 : i32
    %c0_i32_0 = arith.constant 0 : i32
    %c0_i32_1 = arith.constant 0 : i32
    return %arg0, %arg1, %c0_i32, %c0_i32_0 : i32, i32, i32, i32
  }
  func.func @transform_4(%arg0: i32, %arg1: i32) -> (i32, i32, i32, i32) {
    %c0_i32 = arith.constant 0 : i32
    %c0_i32_0 = arith.constant 0 : i32
    %c0_i32_1 = arith.constant 0 : i32
    return %arg0, %arg1, %c0_i32, %c0_i32_0 : i32, i32, i32, i32
  }
}

module attributes {stable_mosaic.version = 11 : i64} {
  func.func @_bn_act_kernel(%arg0: i32, %arg1: memref<640x128xf32, #tpu.memory_space<vmem>>, %arg2: memref<1x128xf32, #tpu.memory_space<vmem>>, %arg3: memref<1x128xf32, #tpu.memory_space<vmem>>, %arg4: memref<640x128xf32, #tpu.memory_space<vmem>>) attributes {dimension_semantics = [#tpu.dimension_semantics<parallel>], iteration_bounds = array<i64: 1>, scalar_prefetch = 0 : i64, scratch_operands = 0 : i64, tpu.core_type = #tpu.core_type<tc>, window_params = [{transform_indices = @transform_0, window_bounds = array<i64: 640, 128>}, {pipeline_mode = #tpu.pipeline_mode<synchronous>, transform_indices = @transform_1, window_bounds = array<i64: 1, 128>}, {pipeline_mode = #tpu.pipeline_mode<synchronous>, transform_indices = @transform_2, window_bounds = array<i64: 1, 128>}, {transform_indices = @transform_3, window_bounds = array<i64: 640, 128>}]} {
    %c0 = arith.constant 0 : index
    %c0_0 = arith.constant 0 : index
    %0 = vector.load %arg1[%c0, %c0_0] : memref<640x128xf32, #tpu.memory_space<vmem>>, vector<640x128xf32>
    %c0_1 = arith.constant 0 : index
    %c0_2 = arith.constant 0 : index
    %1 = vector.load %arg2[%c0_1, %c0_2] : memref<1x128xf32, #tpu.memory_space<vmem>>, vector<1x128xf32>
    %2 = vector.broadcast %1 : vector<1x128xf32> to vector<640x128xf32>
    %3 = arith.mulf %0, %2 : vector<640x128xf32>
    %c0_3 = arith.constant 0 : index
    %c0_4 = arith.constant 0 : index
    %4 = vector.load %arg3[%c0_3, %c0_4] : memref<1x128xf32, #tpu.memory_space<vmem>>, vector<1x128xf32>
    %5 = vector.broadcast %4 : vector<1x128xf32> to vector<640x128xf32>
    %6 = arith.addf %3, %5 : vector<640x128xf32>
    %cst = arith.constant 0.000000e+00 : f32
    %7 = vector.broadcast %cst : f32 to vector<640x128xf32>
    %8 = arith.maximumf %6, %7 : vector<640x128xf32>
    %c0_5 = arith.constant 0 : index
    %c0_6 = arith.constant 0 : index
    %9 = vector.load %arg4[%c0_5, %c0_6] : memref<640x128xf32, #tpu.memory_space<vmem>>, vector<640x128xf32>
    tpu.vector_store %arg4[%c0_5, %c0_6], %8 {strides = array<i32>} : memref<640x128xf32, #tpu.memory_space<vmem>>, vector<640x128xf32>,
    return
  }
  func.func @transform_0(%arg0: i32) -> (i32, i32) {
    %c0_i32 = arith.constant 0 : i32
    %c0_i32_0 = arith.constant 0 : i32
    return %arg0, %c0_i32 : i32, i32
  }
  func.func @transform_1(%arg0: i32) -> (i32, i32) {
    %c0_i32 = arith.constant 0 : i32
    %c0_i32_0 = arith.constant 0 : i32
    %c0_i32_1 = arith.constant 0 : i32
    return %c0_i32, %c0_i32_0 : i32, i32
  }
  func.func @transform_2(%arg0: i32) -> (i32, i32) {
    %c0_i32 = arith.constant 0 : i32
    %c0_i32_0 = arith.constant 0 : i32
    %c0_i32_1 = arith.constant 0 : i32
    return %c0_i32, %c0_i32_0 : i32, i32
  }
  func.func @transform_3(%arg0: i32) -> (i32, i32) {
    %c0_i32 = arith.constant 0 : i32
    %c0_i32_0 = arith.constant 0 : i32
    return %arg0, %c0_i32 : i32, i32
  }
}

</mosaic_0001>

<llo_original>
// kernel: unit3d_forward.3
$region0: #{unit3d_forward.3}
  #allocation0 [shape = 'u32[]', space=smem, size = 0x4, offset = 0x4, fixed_abs, tag = 'smem constant byte address 0x4 - core index']
  #allocation1 [shape = 'u32[72,128]{1,0:T(1,128)}', space=vmem, size = 0x9000, scoped, tag = 'internal scratch']
  %s0 = inlined_call_operand.vmem [shape: f32[640,128], index: 0, kind: input, shape index: {}, may-alias: {0,3}]
  %s1 = inlined_call_operand.vmem [shape: f32[1,128], index: 1, kind: input, shape index: {}]
  %s2 = inlined_call_operand.vmem [shape: f32[1,128], index: 2, kind: input, shape index: {}]
  %s3 = inlined_call_operand.vmem [shape: f32[640,128], index: 3, kind: output, shape index: {}, may-alias: {0,3}]
  %s4 = sld [smem:[#allocation0]]
  $region22: #{unit3d_forward.3} parent=0
    _
  %s6 = ssub.s32 1, %s4
  %s7 = scalar_select 0, %s6, %s4
  // Predicated region
  $region2: #{unit3d_forward.3} parent=0 // pred_check
    _
  $region3: #{unit3d_forward.3} parent=0 // pred_check_branch
    %9 = sbr.rel (0) target = $region5
  $region4: #{unit3d_forward.3} parent=0 // pred_region
    _
  $region5: #{unit3d_forward.3} parent=0 // pred_fallthru
    _
  // Predicated region
  $region6: #{unit3d_forward.3} parent=0 // pred_check
    _
  $region7: #{unit3d_forward.3} parent=0 // pred_check_branch
    %11 = sbr.rel (0) target = $region9
  $region8: #{unit3d_forward.3} parent=0 // pred_region
    _
  $region9: #{unit3d_forward.3} parent=0 // pred_fallthru
    _
  // Predicated region
  $region10: #{unit3d_forward.3} parent=0 // pred_check
    _
  $region11: #{unit3d_forward.3} parent=0 // pred_check_branch
    %13 = sbr.rel (0) target = $region13
  $region12: #{unit3d_forward.3} parent=0 // pred_region
    _
  $region13: #{unit3d_forward.3} parent=0 // pred_fallthru
    _
  %v14 = vld [vmem:[%s0] sm:$0xff]
  %v15 = vld [vmem:[%s0 + $0x8] sm:$0xff]
  %v16 = vld [vmem:[%s0 + $0x10] sm:$0xff]
  %v17 = vld [vmem:[%s0 + $0x18] sm:$0xff]
  %v18 = vld [vmem:[%s0 + $0x20] sm:$0xff]
  %v19 = vld [vmem:[%s0 + $0x28] sm:$0xff]
  %v20 = vld [vmem:[%s0 + $0x30] sm:$0xff]
  %v21 = vld [vmem:[%s0 + $0x38] sm:$0xff]
  %v22 = vld [vmem:[%s0 + $0x40] sm:$0xff]
  %v23 = vld [vmem:[%s0 + $0x48] sm:$0xff]
  %v24 = vld [vmem:[%s0 + $0x50] sm:$0xff]
  %v25 = vld [vmem:[%s0 + $0x58] sm:$0xff]
  %v26 = vld [vmem:[%s0 + $0x60] sm:$0xff]
  %v27 = vld [vmem:[%s0 + $0x68] sm:$0xff]
  %v28 = vld [vmem:[%s0 + $0x70] sm:$0xff]
  %v29 = vld [vmem:[%s0 + $0x78] sm:$0xff]
  %v30 = vld [vmem:[%s0 + $0x80] sm:$0xff]
  %v31 = vld [vmem:[%s0 + $0x88] sm:$0xff]
  %v32 = vld [vmem:[%s0 + $0x90] sm:$0xff]
  %v33 = vld [vmem:[%s0 + $0x98] sm:$0xff]
  %v34 = vld [vmem:[%s0 + $0xa0] sm:$0xff]
  %v35 = vld [vmem:[%s0 + $0xa8] sm:$0xff]
  %v36 = vld [vmem:[%s0 + $0xb0] sm:$0xff]
  %v37 = vld [vmem:[%s0 + $0xb8] sm:$0xff]
  %v38 = vld [vmem:[%s0 + $0xc0] sm:$0xff]
  %v39 = vld [vmem:[%s0 + $0xc8] sm:$0xff]
  %v40 = vld [vmem:[%s0 + $0xd0] sm:$0xff]
  %v41 = vld [vmem:[%s0 + $0xd8] sm:$0xff]
  %v42 = vld [vmem:[%s0 + $0xe0] sm:$0xff]
  %v43 = vld [vmem:[%s0 + $0xe8] sm:$0xff]
  %v44 = vld [vmem:[%s0 + $0xf0] sm:$0xff]
  %v45 = vld [vmem:[%s0 + $0xf8] sm:$0xff]
  %v46 = vld [vmem:[%s0 + $0x100] sm:$0xff]
  %v47 = vld [vmem:[%s0 + $0x108] sm:$0xff]
  %v48 = vld [vmem:[%s0 + $0x110] sm:$0xff]
  %v49 = vld [vmem:[%s0 + $0x118] sm:$0xff]
  %v50 = vld [vmem:[%s0 + $0x120] sm:$0xff]
  %v51 = vld [vmem:[%s0 + $0x128] sm:$0xff]
  %v52 = vld [vmem:[%s0 + $0x130] sm:$0xff]
  %v53 = vld [vmem:[%s0 + $0x138] sm:$0xff]
  %v54 = vld [vmem:[%s0 + $0x140] sm:$0xff]
  %v55 = vld [vmem:[%s0 + $0x148] sm:$0xff]
  %v56 = vld [vmem:[%s0 + $0x150] sm:$0xff]
  %v57 = vld [vmem:[%s0 + $0x158] sm:$0xff]
  %v58 = vld [vmem:[%s0 + $0x160] sm:$0xff]
  %v59 = vld [vmem:[%s0 + $0x168] sm:$0xff]
  %v60 = vld [vmem:[%s0 + $0x170] sm:$0xff]
  %v61 = vld [vmem:[%s0 + $0x178] sm:$0xff]
  %v62 = vld [vmem:[%s0 + $0x180] sm:$0xff]
  %v63 = vld [vmem:[%s0 + $0x188] sm:$0xff]
  %v64 = vld [vmem:[%s0 + $0x190] sm:$0xff]
  %v65 = vld [vmem:[%s0 + $0x198] sm:$0xff]
  %v66 = vld [vmem:[%s0 + $0x1a0] sm:$0xff]
  %v67 = vld [vmem:[%s0 + $0x1a8] sm:$0xff]
  %v68 = vld [vmem:[%s0 + $0x1b0] sm:$0xff]
  %v69 = vld [vmem:[%s0 + $0x1b8] sm:$0xff]
  %v70 = vld [vmem:[%s0 + $0x1c0] sm:$0xff]
  %v71 = vld [vmem:[%s0 + $0x1c8] sm:$0xff]
  %v72 = vld [vmem:[%s0 + $0x1d0] sm:$0xff]
  %v73 = vld [vmem:[%s0 + $0x1d8] sm:$0xff]
  %v74 = vld [vmem:[%s0 + $0x1e0] sm:$0xff]
  %v75 = vld [vmem:[%s0 + $0x1e8] sm:$0xff]
  %v76 = vld [vmem:[%s0 + $0x1f0] sm:$0xff]
  %v77 = vld [vmem:[%s0 + $0x1f8] sm:$0xff]
  %v78 = vld [vmem:[%s0 + $0x200] sm:$0xff]
  %v79 = vld [vmem:[%s0 + $0x208] sm:$0xff]
  %v80 = vld [vmem:[%s0 + $0x210] sm:$0xff]
  %v81 = vld [vmem:[%s0 + $0x218] sm:$0xff]
  %v82 = vld [vmem:[%s0 + $0x220] sm:$0xff]
  %v83 = vld [vmem:[%s0 + $0x228] sm:$0xff]
  %v84 = vld [vmem:[%s0 + $0x230] sm:$0xff]
  %v85 = vld [vmem:[%s0 + $0x238] sm:$0xff]
  %v86 = vld [vmem:[%s0 + $0x240] sm:$0xff]
  %v87 = vld [vmem:[%s0 + $0x248] sm:$0xff]
  %v88 = vld [vmem:[%s0 + $0x250] sm:$0xff]
  %v89 = vld [vmem:[%s0 + $0x258] sm:$0xff]
  %v90 = vld [vmem:[%s0 + $0x260] sm:$0xff]
  %v91 = vld [vmem:[%s0 + $0x268] sm:$0xff]
  %v92 = vld [vmem:[%s0 + $0x270] sm:$0xff]
  %v93 = vld [vmem:[%s0 + $0x278] sm:$0xff]
  %v94 = vld [vmem:[%s1] sm:$0x1]
  %v96 = vperm.slane %v94, 0
  %v98 = vmul.f32 %v14, %v96
  %v99 = vmul.f32 %v15, %v96
  %v100 = vmul.f32 %v16, %v96
  %v101 = vmul.f32 %v17, %v96
  %v102 = vmul.f32 %v18, %v96
  %v103 = vmul.f32 %v19, %v96
  %v104 = vmul.f32 %v20, %v96
  %v105 = vmul.f32 %v21, %v96
  %v106 = vmul.f32 %v22, %v96
  %v107 = vmul.f32 %v23, %v96
  %v108 = vmul.f32 %v24, %v96
  %v109 = vmul.f32 %v25, %v96
  %v110 = vmul.f32 %v26, %v96
  %v111 = vmul.f32 %v27, %v96
  %v112 = vmul.f32 %v28, %v96
  %v113 = vmul.f32 %v29, %v96
  %v114 = vmul.f32 %v30, %v96
  %v115 = vmul.f32 %v31, %v96
  %v116 = vmul.f32 %v32, %v96
  %v117 = vmul.f32 %v33, %v96
  %v118 = vmul.f32 %v34, %v96
  %v119 = vmul.f32 %v35, %v96
  %v120 = vmul.f32 %v36, %v96
  %v121 = vmul.f32 %v37, %v96
  %v122 = vmul.f32 %v38, %v96
  %v123 = vmul.f32 %v39, %v96
  %v124 = vmul.f32 %v40, %v96
  %v125 = vmul.f32 %v41, %v96
  %v126 = vmul.f32 %v42, %v96
  %v127 = vmul.f32 %v43, %v96
  %v128 = vmul.f32 %v44, %v96
  %v129 = vmul.f32 %v45, %v96
  %v130 = vmul.f32 %v46, %v96
  %v131 = vmul.f32 %v47, %v96
  %v132 = vmul.f32 %v48, %v96
  %v133 = vmul.f32 %v49, %v96
  %v134 = vmul.f32 %v50, %v96
  %v135 = vmul.f32 %v51, %v96
  %v136 = vmul.f32 %v52, %v96
  %v137 = vmul.f32 %v53, %v96
  %v138 = vmul.f32 %v54, %v96
  %v139 = vmul.f32 %v55, %v96
  %v140 = vmul.f32 %v56, %v96
  %v141 = vmul.f32 %v57, %v96
  %v142 = vmul.f32 %v58, %v96
  %v143 = vmul.f32 %v59, %v96
  %v144 = vmul.f32 %v60, %v96
  %v145 = vmul.f32 %v61, %v96
  %v146 = vmul.f32 %v62, %v96
  %v147 = vmul.f32 %v63, %v96
  %v148 = vmul.f32 %v64, %v96
  %v149 = vmul.f32 %v65, %v96
  %v150 = vmul.f32 %v66, %v96
  %v151 = vmul.f32 %v67, %v96
  %v152 = vmul.f32 %v68, %v96
  %v153 = vmul.f32 %v69, %v96
  %v154 = vmul.f32 %v70, %v96
  %v155 = vmul.f32 %v71, %v96
  %v156 = vmul.f32 %v72, %v96
  %v157 = vmul.f32 %v73, %v96
  %v158 = vmul.f32 %v74, %v96
  %v159 = vmul.f32 %v75, %v96
  %v160 = vmul.f32 %v76, %v96
  %v161 = vmul.f32 %v77, %v96
  %v162 = vmul.f32 %v78, %v96
  %v163 = vmul.f32 %v79, %v96
  %v164 = vmul.f32 %v80, %v96
  %v165 = vmul.f32 %v81, %v96
  %v166 = vmul.f32 %v82, %v96
  %v167 = vmul.f32 %v83, %v96
  %v168 = vmul.f32 %v84, %v96
  %v169 = vmul.f32 %v85, %v96
  %v170 = vmul.f32 %v86, %v96
  %v171 = vmul.f32 %v87, %v96
  %v172 = vmul.f32 %v88, %v96
  %v173 = vmul.f32 %v89, %v96
  %v174 = vmul.f32 %v90, %v96
  %v175 = vmul.f32 %v91, %v96
  %v176 = vmul.f32 %v92, %v96
  %v177 = vmul.f32 %v93, %v96
  %v178 = vld [vmem:[%s2] sm:$0x1]
  %v180 = vperm.slane %v178, 0
  %v182 = vadd.f32 %v98, %v180
  %v183 = vadd.f32 %v99, %v180
  %v184 = vadd.f32 %v100, %v180
  %v185 = vadd.f32 %v101, %v180
  %v186 = vadd.f32 %v102, %v180
  %v187 = vadd.f32 %v103, %v180
  %v188 = vadd.f32 %v104, %v180
  %v189 = vadd.f32 %v105, %v180
  %v190 = vadd.f32 %v106, %v180
  %v191 = vadd.f32 %v107, %v180
  %v192 = vadd.f32 %v108, %v180
  %v193 = vadd.f32 %v109, %v180
  %v194 = vadd.f32 %v110, %v180
  %v195 = vadd.f32 %v111, %v180
  %v196 = vadd.f32 %v112, %v180
  %v197 = vadd.f32 %v113, %v180
  %v198 = vadd.f32 %v114, %v180
  %v199 = vadd.f32 %v115, %v180
  %v200 = vadd.f32 %v116, %v180
  %v201 = vadd.f32 %v117, %v180
  %v202 = vadd.f32 %v118, %v180
  %v203 = vadd.f32 %v119, %v180
  %v204 = vadd.f32 %v120, %v180
  %v205 = vadd.f32 %v121, %v180
  %v206 = vadd.f32 %v122, %v180
  %v207 = vadd.f32 %v123, %v180
  %v208 = vadd.f32 %v124, %v180
  %v209 = vadd.f32 %v125, %v180
  %v210 = vadd.f32 %v126, %v180
  %v211 = vadd.f32 %v127, %v180
  %v212 = vadd.f32 %v128, %v180
  %v213 = vadd.f32 %v129, %v180
  %v214 = vadd.f32 %v130, %v180
  %v215 = vadd.f32 %v131, %v180
  %v216 = vadd.f32 %v132, %v180
  %v217 = vadd.f32 %v133, %v180
  %v218 = vadd.f32 %v134, %v180
  %v219 = vadd.f32 %v135, %v180
  %v220 = vadd.f32 %v136, %v180
  %v221 = vadd.f32 %v137, %v180
  %v222 = vadd.f32 %v138, %v180
  %v223 = vadd.f32 %v139, %v180
  %v224 = vadd.f32 %v140, %v180
  %v225 = vadd.f32 %v141, %v180
  %v226 = vadd.f32 %v142, %v180
  %v227 = vadd.f32 %v143, %v180
  %v228 = vadd.f32 %v144, %v180
  %v229 = vadd.f32 %v145, %v180
  %v230 = vadd.f32 %v146, %v180
  %v231 = vadd.f32 %v147, %v180
  %v232 = vadd.f32 %v148, %v180
  %v233 = vadd.f32 %v149, %v180
  %v234 = vadd.f32 %v150, %v180
  %v235 = vadd.f32 %v151, %v180
  %v236 = vadd.f32 %v152, %v180
  %v237 = vadd.f32 %v153, %v180
  %v238 = vadd.f32 %v154, %v180
  %v239 = vadd.f32 %v155, %v180
  %v240 = vadd.f32 %v156, %v180
  %v241 = vadd.f32 %v157, %v180
  %v242 = vadd.f32 %v158, %v180
  %v243 = vadd.f32 %v159, %v180
  %v244 = vadd.f32 %v160, %v180
  %v245 = vadd.f32 %v161, %v180
  %v246 = vadd.f32 %v162, %v180
  %v247 = vadd.f32 %v163, %v180
  %v248 = vadd.f32 %v164, %v180
  %v249 = vadd.f32 %v165, %v180
  %v250 = vadd.f32 %v166, %v180
  %v251 = vadd.f32 %v167, %v180
  %v252 = vadd.f32 %v168, %v180
  %v253 = vadd.f32 %v169, %v180
  %v254 = vadd.f32 %v170, %v180
  %v255 = vadd.f32 %v171, %v180
  %v256 = vadd.f32 %v172, %v180
  %v257 = vadd.f32 %v173, %v180
  %v258 = vadd.f32 %v174, %v180
  %v259 = vadd.f32 %v175, %v180
  %v260 = vadd.f32 %v176, %v180
  %v261 = vadd.f32 %v177, %v180
  %v262 = vmax.f32 %v182, 0.0
  %v263 = vmax.f32 %v183, 0.0
  %v264 = vmax.f32 %v184, 0.0
  %v265 = vmax.f32 %v185, 0.0
  %v266 = vmax.f32 %v186, 0.0
  %v267 = vmax.f32 %v187, 0.0
  %v268 = vmax.f32 %v188, 0.0
  %v269 = vmax.f32 %v189, 0.0
  %v270 = vmax.f32 %v190, 0.0
  %v271 = vmax.f32 %v191, 0.0
  %v272 = vmax.f32 %v192, 0.0
  %v273 = vmax.f32 %v193, 0.0
  %v274 = vmax.f32 %v194, 0.0
  %v275 = vmax.f32 %v195, 0.0
  %v276 = vmax.f32 %v196, 0.0
  %v277 = vmax.f32 %v197, 0.0
  %v278 = vmax.f32 %v198, 0.0
  %v279 = vmax.f32 %v199, 0.0
  %v280 = vmax.f32 %v200, 0.0
  %v281 = vmax.f32 %v201, 0.0
  %v282 = vmax.f32 %v202, 0.0
  %v283 = vmax.f32 %v203, 0.0
  %v284 = vmax.f32 %v204, 0.0
  %v285 = vmax.f32 %v205, 0.0
  %v286 = vmax.f32 %v206, 0.0
  %v287 = vmax.f32 %v207, 0.0
  %v288 = vmax.f32 %v208, 0.0
  %v289 = vmax.f32 %v209, 0.0
  %v290 = vmax.f32 %v210, 0.0
  %v291 = vmax.f32 %v211, 0.0
  %v292 = vmax.f32 %v212, 0.0
  %v293 = vmax.f32 %v213, 0.0
  %v294 = vmax.f32 %v214, 0.0
  %v295 = vmax.f32 %v215, 0.0
  %v296 = vmax.f32 %v216, 0.0
  %v297 = vmax.f32 %v217, 0.0
  %v298 = vmax.f32 %v218, 0.0
  %v299 = vmax.f32 %v219, 0.0
  %v300 = vmax.f32 %v220, 0.0
  %v301 = vmax.f32 %v221, 0.0
  %v302 = vmax.f32 %v222, 0.0
  %v303 = vmax.f32 %v223, 0.0
  %v304 = vmax.f32 %v224, 0.0
  %v305 = vmax.f32 %v225, 0.0
  %v306 = vmax.f32 %v226, 0.0
  %v307 = vmax.f32 %v227, 0.0
  %v308 = vmax.f32 %v228, 0.0
  %v309 = vmax.f32 %v229, 0.0
  %v310 = vmax.f32 %v230, 0.0
  %v311 = vmax.f32 %v231, 0.0
  %v312 = vmax.f32 %v232, 0.0
  %v313 = vmax.f32 %v233, 0.0
  %v314 = vmax.f32 %v234, 0.0
  %v315 = vmax.f32 %v235, 0.0
  %v316 = vmax.f32 %v236, 0.0
  %v317 = vmax.f32 %v237, 0.0
  %v318 = vmax.f32 %v238, 0.0
  %v319 = vmax.f32 %v239, 0.0
  %v320 = vmax.f32 %v240, 0.0
  %v321 = vmax.f32 %v241, 0.0
  %v322 = vmax.f32 %v242, 0.0
  %v323 = vmax.f32 %v243, 0.0
  %v324 = vmax.f32 %v244, 0.0
  %v325 = vmax.f32 %v245, 0.0
  %v326 = vmax.f32 %v246, 0.0
  %v327 = vmax.f32 %v247, 0.0
  %v328 = vmax.f32 %v248, 0.0
  %v329 = vmax.f32 %v249, 0.0
  %v330 = vmax.f32 %v250, 0.0
  %v331 = vmax.f32 %v251, 0.0
  %v332 = vmax.f32 %v252, 0.0
  %v333 = vmax.f32 %v253, 0.0
  %v334 = vmax.f32 %v254, 0.0
  %v335 = vmax.f32 %v255, 0.0
  %v336 = vmax.f32 %v256, 0.0
  %v337 = vmax.f32 %v257, 0.0
  %v338 = vmax.f32 %v258, 0.0
  %v339 = vmax.f32 %v259, 0.0
  %v340 = vmax.f32 %v260, 0.0
  %v341 = vmax.f32 %v261, 0.0
  %342 = vst [vmem:[%s3] sm:$0xff] %v262
  %343 = vst [vmem:[%s3 + $0x8] sm:$0xff] %v263
  %344 = vst [vmem:[%s3 + $0x10] sm:$0xff] %v264
  %345 = vst [vmem:[%s3 + $0x18] sm:$0xff] %v265
  %346 = vst [vmem:[%s3 + $0x20] sm:$0xff] %v266
  %347 = vst [vmem:[%s3 + $0x28] sm:$0xff] %v267
  %348 = vst [vmem:[%s3 + $0x30] sm:$0xff] %v268
  %349 = vst [vmem:[%s3 + $0x38] sm:$0xff] %v269
  %350 = vst [vmem:[%s3 + $0x40] sm:$0xff] %v270
  %351 = vst [vmem:[%s3 + $0x48] sm:$0xff] %v271
  %352 = vst [vmem:[%s3 + $0x50] sm:$0xff] %v272
  %353 = vst [vmem:[%s3 + $0x58] sm:$0xff] %v273
  %354 = vst [vmem:[%s3 + $0x60] sm:$0xff] %v274
  %355 = vst [vmem:[%s3 + $0x68] sm:$0xff] %v275
  %356 = vst [vmem:[%s3 + $0x70] sm:$0xff] %v276
  %357 = vst [vmem:[%s3 + $0x78] sm:$0xff] %v277
  %358 = vst [vmem:[%s3 + $0x80] sm:$0xff] %v278
  %359 = vst [vmem:[%s3 + $0x88] sm:$0xff] %v279
  %360 = vst [vmem:[%s3 + $0x90] sm:$0xff] %v280
  %361 = vst [vmem:[%s3 + $0x98] sm:$0xff] %v281
  %362 = vst [vmem:[%s3 + $0xa0] sm:$0xff] %v282
  %363 = vst [vmem:[%s3 + $0xa8] sm:$0xff] %v283
  %364 = vst [vmem:[%s3 + $0xb0] sm:$0xff] %v284
  %365 = vst [vmem:[%s3 + $0xb8] sm:$0xff] %v285
  %366 = vst [vmem:[%s3 + $0xc0] sm:$0xff] %v286
  %367 = vst [vmem:[%s3 + $0xc8] sm:$0xff] %v287
  %368 = vst [vmem:[%s3 + $0xd0] sm:$0xff] %v288
  %369 = vst [vmem:[%s3 + $0xd8] sm:$0xff] %v289
  %370 = vst [vmem:[%s3 + $0xe0] sm:$0xff] %v290
  %371 = vst [vmem:[%s3 + $0xe8] sm:$0xff] %v291
  %372 = vst [vmem:[%s3 + $0xf0] sm:$0xff] %v292
  %373 = vst [vmem:[%s3 + $0xf8] sm:$0xff] %v293
  %374 = vst [vmem:[%s3 + $0x100] sm:$0xff] %v294
  %375 = vst [vmem:[%s3 + $0x108] sm:$0xff] %v295
  %376 = vst [vmem:[%s3 + $0x110] sm:$0xff] %v296
  %377 = vst [vmem:[%s3 + $0x118] sm:$0xff] %v297
  %378 = vst [vmem:[%s3 + $0x120] sm:$0xff] %v298
  %379 = vst [vmem:[%s3 + $0x128] sm:$0xff] %v299
  %380 = vst [vmem:[%s3 + $0x130] sm:$0xff] %v300
  %381 = vst [vmem:[%s3 + $0x138] sm:$0xff] %v301
  %382 = vst [vmem:[%s3 + $0x140] sm:$0xff] %v302
  %383 = vst [vmem:[%s3 + $0x148] sm:$0xff] %v303
  %384 = vst [vmem:[%s3 + $0x150] sm:$0xff] %v304
  %385 = vst [vmem:[%s3 + $0x158] sm:$0xff] %v305
  %386 = vst [vmem:[%s3 + $0x160] sm:$0xff] %v306
  %387 = vst [vmem:[%s3 + $0x168] sm:$0xff] %v307
  %388 = vst [vmem:[%s3 + $0x170] sm:$0xff] %v308
  %389 = vst [vmem:[%s3 + $0x178] sm:$0xff] %v309
  %390 = vst [vmem:[%s3 + $0x180] sm:$0xff] %v310
  %391 = vst [vmem:[%s3 + $0x188] sm:$0xff] %v311
  %392 = vst [vmem:[%s3 + $0x190] sm:$0xff] %v312
  %393 = vst [vmem:[%s3 + $0x198] sm:$0xff] %v313
  %394 = vst [vmem:[%s3 + $0x1a0] sm:$0xff] %v314
  %395 = vst [vmem:[%s3 + $0x1a8] sm:$0xff] %v315
  %396 = vst [vmem:[%s3 + $0x1b0] sm:$0xff] %v316
  %397 = vst [vmem:[%s3 + $0x1b8] sm:$0xff] %v317
  %398 = vst [vmem:[%s3 + $0x1c0] sm:$0xff] %v318
  %399 = vst [vmem:[%s3 + $0x1c8] sm:$0xff] %v319
  %400 = vst [vmem:[%s3 + $0x1d0] sm:$0xff] %v320
  %401 = vst [vmem:[%s3 + $0x1d8] sm:$0xff] %v321
  %402 = vst [vmem:[%s3 + $0x1e0] sm:$0xff] %v322
  %403 = vst [vmem:[%s3 + $0x1e8] sm:$0xff] %v323
  %404 = vst [vmem:[%s3 + $0x1f0] sm:$0xff] %v324
  %405 = vst [vmem:[%s3 + $0x1f8] sm:$0xff] %v325
  %406 = vst [vmem:[%s3 + $0x200] sm:$0xff] %v326
  %407 = vst [vmem:[%s3 + $0x208] sm:$0xff] %v327
  %408 = vst [vmem:[%s3 + $0x210] sm:$0xff] %v328
  %409 = vst [vmem:[%s3 + $0x218] sm:$0xff] %v329
  %410 = vst [vmem:[%s3 + $0x220] sm:$0xff] %v330
  %411 = vst [vmem:[%s3 + $0x228] sm:$0xff] %v331
  %412 = vst [vmem:[%s3 + $0x230] sm:$0xff] %v332
  %413 = vst [vmem:[%s3 + $0x238] sm:$0xff] %v333
  %414 = vst [vmem:[%s3 + $0x240] sm:$0xff] %v334
  %415 = vst [vmem:[%s3 + $0x248] sm:$0xff] %v335
  %416 = vst [vmem:[%s3 + $0x250] sm:$0xff] %v336
  %417 = vst [vmem:[%s3 + $0x258] sm:$0xff] %v337
  %418 = vst [vmem:[%s3 + $0x260] sm:$0xff] %v338
  %419 = vst [vmem:[%s3 + $0x268] sm:$0xff] %v339
  %420 = vst [vmem:[%s3 + $0x270] sm:$0xff] %v340
  %421 = vst [vmem:[%s3 + $0x278] sm:$0xff] %v341
  // Predicated region
  $region14: #{unit3d_forward.3} parent=0 // pred_check
    _
  $region15: #{unit3d_forward.3} parent=0 // pred_check_branch
    %423 = sbr.rel (0) target = $region17
  $region16: #{unit3d_forward.3} parent=0 // pred_region
    _
  $region17: #{unit3d_forward.3} parent=0 // pred_fallthru
    _
  // Predicated region
  $region18: #{unit3d_forward.3} parent=0 // pred_check
    _
  $region19: #{unit3d_forward.3} parent=0 // pred_check_branch
    %425 = sbr.rel (0) target = $region21
  $region20: #{unit3d_forward.3} parent=0 // pred_region
    _
  $region21: #{unit3d_forward.3} parent=0 // pred_fallthru
    _

// kernel: unit3d_forward.2
$region0: #{unit3d_forward.2}
  #allocation0 [shape = 'u32[]', space=smem, size = 0x4, offset = 0x4, fixed_abs, tag = 'smem constant byte address 0x4 - core index']
  #allocation1 [shape = 'u32[72,128]{1,0:T(1,128)}', space=vmem, size = 0x9000, scoped, tag = 'internal scratch']
  %s0 = inlined_call_operand.vmem [shape: bf16[2,6,102,4], index: 0, kind: input, shape index: {}]
  %s1 = inlined_call_operand.vmem [shape: bf16[3,36,128], index: 1, kind: input, shape index: {}]
  %s2 = inlined_call_operand.vmem [shape: f32[2,4,80,128], index: 2, kind: output, shape index: {0}]
  %s3 = inlined_call_operand.vmem [shape: f32[2,4,1,128], index: 3, kind: output, shape index: {1}]
  %s4 = inlined_call_operand.vmem [shape: f32[2,4,1,128], index: 4, kind: output, shape index: {2}]
  %5 = xla_tuple %s2, %s3, %s4
  %s6 = sld [smem:[#allocation0]]
  $region57: #{unit3d_forward.2} parent=0
    _
  %s8 = ssub.s32 1, %s6
  %s9 = scalar_select 0, %s8, %s6
  loop: start=0, step=1, limit=10
  $region2: #{unit3d_forward.2} parent=0 // loop_pre_header
    _
  $region3: #{unit3d_forward.2} parent=0 // loop_header
    %s11 = sphi 0, %s15
    %p12 = scmp.ge.s32.totalorder %s11, 10
    %s18 = sphi 0, %s30
    %s19 = sphi 0, %s26
    %s20 = sphi 0, %s18
    %s21 = sphi 0, %s19
    %s22 = sphi 0, %s20
    %s23 = sphi 0, %s21
    %s33 = sphi 0, %s35
    %s36 = sphi 0, %s33
    %s37 = sphi 0, %s36
    %s53 = sphi 0, %s37
    %s57 = sphi 0, %s57
    %s59 = sphi 0, %s57
    %s60 = sphi 0, %s59
    %s74 = sphi 0, %s60
    %s82 = sphi 0, %s84
    %s85 = sphi 0, %s82
    %s86 = sphi 0, %s85
    %s102 = sphi 0, %s86
    %s110 = sphi 0, %s112
    %s113 = sphi 0, %s110
    %s114 = sphi 0, %s113
    %s130 = sphi 0, %s114
    %s138 = sphi 0, %s140
    %s141 = sphi 0, %s138
    %s142 = sphi 0, %s141
    %s158 = sphi 0, %s142
  $region4: #{unit3d_forward.2} parent=0 // loop_header_branch
    %14 = sbr.rel (%p12) target = $region8
  $region5: #{unit3d_forward.2} parent=0 // loop_body
    %s16 = ssub.s32 %s11, 1
    %s17 = ssub.s32 %s11, 2
    %s24 = sadd.s32 1, %s19
    %p25 = scmp.ge.s32.totalorder %s24, 4
    %s26 = scalar_select %p25, 0, %s24
    %s27 = sadd.s32 1, %s18
    %s28 = scalar_select %p25, %s27, %s18
    %p29 = scmp.ge.s32.totalorder %s28, 2
    %s30 = scalar_select %p29, 0, %s28
    %s31 = ssub.s32 %s18, %s30
    %p32 = scmp.eq.s32.totalorder %s31, 0
    %s34 = sadd.s32 %s33, 1
    %s35 = scalar_select %p32, %s33, %s34
    %p38 = pneg %p32
    %p39 = scmp.eq.s32.totalorder %s11, 7
    %p40 = por %p38, %p39
    %p41 = scmp.ne.s32.totalorder %s33, %s36
    %p42 = scmp.eq.s32.totalorder %s11, 0
    %p43 = por %p41, %p42
    %p44 = scmp.ne.s32.totalorder %s33, %s36
    %p45 = scmp.eq.s32.totalorder %s16, 7
    %p46 = por %p44, %p45
    %p47 = scmp.ne.s32.totalorder %s36, %s37
    %p48 = scmp.eq.s32.totalorder %s16, 0
    %p49 = por %p47, %p48
    %p50 = scmp.ne.s32.totalorder %s36, %s37
    %p51 = scmp.eq.s32.totalorder %s17, 7
    %p52 = por %p50, %p51
    %p54 = scmp.ne.s32.totalorder %s37, %s53
    %p55 = scmp.eq.s32.totalorder %s17, 0
    %p56 = por %p54, %p55
    %s58 = sadd.s32 %s57, 1
    %p61 = scmp.eq.s32.totalorder %s11, 7
    %p62 = scmp.ne.s32.totalorder %s57, %s59
    %p63 = scmp.eq.s32.totalorder %s11, 0
    %p64 = por %p62, %p63
    %p65 = scmp.ne.s32.totalorder %s57, %s59
    %p66 = scmp.eq.s32.totalorder %s16, 7
    %p67 = por %p65, %p66
    %p68 = scmp.ne.s32.totalorder %s59, %s60
    %p69 = scmp.eq.s32.totalorder %s16, 0
    %p70 = por %p68, %p69
    %p71 = scmp.ne.s32.totalorder %s59, %s60
    %p72 = scmp.eq.s32.totalorder %s17, 7
    %p73 = por %p71, %p72
    %p75 = scmp.ne.s32.totalorder %s60, %s74
    %p76 = scmp.eq.s32.totalorder %s17, 0
    %p77 = por %p75, %p76
    %s78 = ssub.s32 %s18, %s30
    %s79 = ssub.s32 %s19, %s26
    %s80 = sor.u32 %s78, %s79
    %p81 = scmp.eq.s32.totalorder %s80, 0
    %s83 = sadd.s32 %s82, 1
    %s84 = scalar_select %p81, %s82, %s83
    %p87 = pneg %p81
    %p88 = scmp.eq.s32.totalorder %s11, 7
    %p89 = por %p87, %p88
    %p90 = scmp.ne.s32.totalorder %s82, %s85
    %p91 = scmp.eq.s32.totalorder %s11, 0
    %p92 = por %p90, %p91
    %p93 = scmp.ne.s32.totalorder %s82, %s85
    %p94 = scmp.eq.s32.totalorder %s16, 7
    %p95 = por %p93, %p94
    %p96 = scmp.ne.s32.totalorder %s85, %s86
    %p97 = scmp.eq.s32.totalorder %s16, 0
    %p98 = por %p96, %p97
    %p99 = scmp.ne.s32.totalorder %s85, %s86
    %p100 = scmp.eq.s32.totalorder %s17, 7
    %p101 = por %p99, %p100
    %p103 = scmp.ne.s32.totalorder %s86, %s102
    %p104 = scmp.eq.s32.totalorder %s17, 0
    %p105 = por %p103, %p104
    %s106 = ssub.s32 %s18, %s30
    %s107 = ssub.s32 %s19, %s26
    %s108 = sor.u32 %s106, %s107
    %p109 = scmp.eq.s32.totalorder %s108, 0
    %s111 = sadd.s32 %s110, 1
    %s112 = scalar_select %p109, %s110, %s111
    %p115 = pneg %p109
    %p116 = scmp.eq.s32.totalorder %s11, 7
    %p117 = por %p115, %p116
    %p118 = scmp.ne.s32.totalorder %s110, %s113
    %p119 = scmp.eq.s32.totalorder %s11, 0
    %p120 = por %p118, %p119
    %p121 = scmp.ne.s32.totalorder %s110, %s113
    %p122 = scmp.eq.s32.totalorder %s16, 7
    %p123 = por %p121, %p122
    %p124 = scmp.ne.s32.totalorder %s113, %s114
    %p125 = scmp.eq.s32.totalorder %s16, 0
    %p126 = por %p124, %p125
    %p127 = scmp.ne.s32.totalorder %s113, %s114
    %p128 = scmp.eq.s32.totalorder %s17, 7
    %p129 = por %p127, %p128
    %p131 = scmp.ne.s32.totalorder %s114, %s130
    %p132 = scmp.eq.s32.totalorder %s17, 0
    %p133 = por %p131, %p132
    %s134 = ssub.s32 %s18, %s30
    %s135 = ssub.s32 %s19, %s26
    %s136 = sor.u32 %s134, %s135
    %p137 = scmp.eq.s32.totalorder %s136, 0
    %s139 = sadd.s32 %s138, 1
    %s140 = scalar_select %p137, %s138, %s139
    %p143 = pneg %p137
    %p144 = scmp.eq.s32.totalorder %s11, 7
    %p145 = por %p143, %p144
    %p146 = scmp.ne.s32.totalorder %s138, %s141
    %p147 = scmp.eq.s32.totalorder %s11, 0
    %p148 = por %p146, %p147
    %p149 = scmp.ne.s32.totalorder %s138, %s141
    %p150 = scmp.eq.s32.totalorder %s16, 7
    %p151 = por %p149, %p150
    %p152 = scmp.ne.s32.totalorder %s141, %s142
    %p153 = scmp.eq.s32.totalorder %s16, 0
    %p154 = por %p152, %p153
    %p155 = scmp.ne.s32.totalorder %s141, %s142
    %p156 = scmp.eq.s32.totalorder %s17, 7
    %p157 = por %p155, %p156
    %p159 = scmp.ne.s32.totalorder %s142, %s158
    %p160 = scmp.eq.s32.totalorder %s17, 0
    %p161 = por %p159, %p160
    %p162 = scmp.le.s32.totalorder 1, %s11
    %p163 = scmp.lt.s32.totalorder %s11, 9
    %p164 = pnand %p162, %p163
    %p165 = pneg %p164
    // Predicated region
    $region9: #{unit3d_forward.2} parent=5 // pred_check
      _
    $region10: #{unit3d_forward.2} parent=5 // pred_check_branch
      %167 = sbr.rel (%p164) target = $region12
    $region11: #{unit3d_forward.2} parent=5 // pred_region
      %s168 = ssub.s32 %s11, 1
      // Predicated region
      $region13: #{unit3d_forward.2} parent=11 // pred_check
        %p169 = pneg %p70
      $region14: #{unit3d_forward.2} parent=11 // pred_check_branch
        %171 = sbr.rel (%p169) target = $region16
      $region15: #{unit3d_forward.2} parent=11 // pred_region
        _
      $region16: #{unit3d_forward.2} parent=11 // pred_fallthru
        _
    $region12: #{unit3d_forward.2} parent=5 // pred_fallthru
      _
    %p172 = scmp.lt.s32.totalorder %s11, 8
    // Predicated region
    $region17: #{unit3d_forward.2} parent=5 // pred_check
      %p173 = pneg %p172
    $region18: #{unit3d_forward.2} parent=5 // pred_check_branch
      %175 = sbr.rel (%p173) target = $region20
    $region19: #{unit3d_forward.2} parent=5 // pred_region
      // Predicated region
      $region21: #{unit3d_forward.2} parent=19 // pred_check
        %p176 = pneg %p43
      $region22: #{unit3d_forward.2} parent=19 // pred_check_branch
        %178 = sbr.rel (%p176) target = $region24
      $region23: #{unit3d_forward.2} parent=19 // pred_region
        %p179 = scmp.lt.s32.totalorder %s18, 1
        %s180 = scalar_select %p179, %s18, 1
        %s181 = smul.addr %s180, 78
        %s182 = smul.addr %s181, 4
        %s183 = scalar_lea.vmem %s0, %s182
      $region24: #{unit3d_forward.2} parent=19 // pred_fallthru
        _
    $region20: #{unit3d_forward.2} parent=5 // pred_fallthru
      _
    %p184 = scmp.le.s32.totalorder 1, %s11
    %p185 = scmp.lt.s32.totalorder %s11, 9
    %p186 = pnand %p184, %p185
    %p187 = pneg %p186
    // Predicated region
    $region25: #{unit3d_forward.2} parent=5 // pred_check
      _
    $region26: #{unit3d_forward.2} parent=5 // pred_check_branch
      %189 = sbr.rel (%p186) target = $region28
    $region27: #{unit3d_forward.2} parent=5 // pred_region
      %s190 = ssub.s32 %s11, 1
      %p191 = scmp.lt.s32.totalorder %s20, 1
      %s192 = scalar_select %p191, %s20, 1
      %s193 = smul.addr %s192, 78
      %s194 = smul.addr %s193, 4
      %s195 = scalar_lea.vmem %s0, %s194
      %p196 = pneg %p49
      %p197 = pneg %p46
      %p198 = pneg %p70
      %p199 = pneg %p67
      %p200 = pneg %p98
      %p201 = pneg %p95
      %p202 = scmp.lt.s32.totalorder %s20, 1
      %s203 = scalar_select %p202, %s20, 1
      %p204 = scmp.lt.s32.totalorder %s21, 3
      %s205 = scalar_select %p204, %s21, 3
      %s206 = smul.addr %s205, 10
      %s207 = smul.addr %s203, 40
      %s208 = sadd.s32 %s206, %s207
      %s209 = smul.addr %s208, 8
      %s210 = scalar_lea.vmem %s2, %s209
      %p211 = pneg %p126
      %p212 = pneg %p123
      %p213 = scmp.lt.s32.totalorder %s20, 1
      %s214 = scalar_select %p213, %s20, 1
      %p215 = scmp.lt.s32.totalorder %s21, 3
      %s216 = scalar_select %p215, %s21, 3
      %s217 = smul.addr %s214, 4
      %s218 = sadd.s32 %s216, %s217
      %s219 = scalar_lea.vmem %s3, %s218
      %p220 = pneg %p154
      %p221 = pneg %p151
      %p222 = scmp.lt.s32.totalorder %s20, 1
      %s223 = scalar_select %p222, %s20, 1
      %p224 = scmp.lt.s32.totalorder %s21, 3
      %s225 = scalar_select %p224, %s21, 3
      %s226 = smul.addr %s223, 4
      %s227 = sadd.s32 %s225, %s226
      %s228 = scalar_lea.vmem %s4, %s227
      %p229 = scmp.lt.s32.totalorder %s20, 1
      %s230 = scalar_select %p229, %s20, 1
      %s231 = smul.addr %s230, 78
      %s232 = smul.addr %s231, 4
      %s233 = scalar_lea.vmem %s0, %s232
      %p234 = scmp.lt.s32.totalorder %s20, 1
      %s235 = scalar_select %p234, %s20, 1
      %p236 = scmp.lt.s32.totalorder %s21, 3
      %s237 = scalar_select %p236, %s21, 3
      %s238 = smul.addr %s237, 10
      %s239 = smul.addr %s235, 40
      %s240 = sadd.s32 %s238, %s239
      %s241 = smul.addr %s240, 8
      %s242 = scalar_lea.vmem %s2, %s241
      %p243 = scmp.lt.s32.totalorder %s20, 1
      %s244 = scalar_select %p243, %s20, 1
      %p245 = scmp.lt.s32.totalorder %s21, 3
      %s246 = scalar_select %p245, %s21, 3
      %s247 = smul.addr %s244, 4
      %s248 = sadd.s32 %s246, %s247
      %s249 = scalar_lea.vmem %s3, %s248
      %p250 = scmp.lt.s32.totalorder %s20, 1
      %s251 = scalar_select %p250, %s20, 1
      %p252 = scmp.lt.s32.totalorder %s21, 3
      %s253 = scalar_select %p252, %s21, 3
      %s254 = smul.addr %s251, 4
      %s255 = sadd.s32 %s253, %s254
      %s256 = scalar_lea.vmem %s4, %s255
      %s258 = smul.u32 %s21, 13
      %s259 = smul.addr %s258, 4
      %s260 = scalar_lea.vmem %s233, %s259
      %v261 = vld [vmem:[%s260] sm:$0xf]
      %v262 = vld [vmem:[%s260 + $0x4] sm:$0xf]
      %v263 = vld [vmem:[%s260 + $0x8] sm:$0xf]
      %v264 = vld [vmem:[%s260 + $0xc] sm:$0xf]
      %v265 = vld [vmem:[%s260 + $0x10] sm:$0xf]
      %v266 = vld [vmem:[%s260 + $0x14] sm:$0xf]
      %v267 = vld [vmem:[%s260 + $0x18] sm:$0xf]
      %v268 = vld [vmem:[%s260 + $0x1c] sm:$0xf]
      %v269 = vld [vmem:[%s260 + $0x20] sm:$0xf]
      %v270 = vld [vmem:[%s260 + $0x24] sm:$0xf]
      %v271 = vld [vmem:[%s260 + $0x28] sm:$0x1]
      %v272 = vld [vmem:[%s260] sm:$0xe]
      %v273 = vld [vmem:[%s260 + $0x4] sm:$0xe]
      %v274 = vld [vmem:[%s260 + $0x28] sm:$0xf]
      %v275 = vld [vmem:[%s260 + $0x2c] sm:$0x1]
      %v276 = vld [vmem:[%s260 + $0x2c] sm:$0x3]
      %v277 = vld [vmem:[%s260 + $0x4] sm:$0xc]
      %v278 = vld [vmem:[%s260 + $0x8] sm:$0xc]
      %v279 = vld [vmem:[%s260 + $0x2c] sm:$0xf]
      %v280 = vld [vmem:[%s260 + $0x30] sm:$0x3]
      %v281 = vld [vmem:[%s260 + $0x30] sm:$0x7]
      %v282 = vld [vmem:[%s260 + $0x8] sm:$0x8]
      %v293 = vunpack.c.l.b16 %v261
      %v294 = vunpack.c.l.b16 %v262
      %v295 = vunpack.c.l.b16 %v263
      %v296 = vunpack.c.l.b16 %v264
      %v297 = vunpack.c.l.b16 %v265
      %v298 = vunpack.c.l.b16 %v266
      %v299 = vunpack.c.l.b16 %v267
      %v300 = vunpack.c.l.b16 %v268
      %v301 = vunpack.c.l.b16 %v269
      %v302 = vunpack.c.l.b16 %v270
      %v303 = vpack.c.b16 %v294, %v293
      %v304 = vpack.c.b16 %v296, %v295
      %v305 = vpack.c.b16 %v298, %v297
      %v306 = vpack.c.b16 %v300, %v299
      %v307 = vpack.c.b16 %v302, %v301
      %v309 = vunpack.c.l.b16 %v271
      %v310 = vpack.c.b16 %v309, %v309
      %vm311 = vsmask.f32 7424
      %v313 = vshrl.u32 %v303, 16
      %v315 = vshll.u32 %v303, 16
      %v317 = vrot.slane %v315, 1
      %v318 = vor.u32 %v313, %v317
      %v320 = vshll.u32 %v304, 16
      %v322 = vrot.slane %v320, 1
      %v323 = vsel %vm311, %v318, %v322
      %v324 = vshrl.u32 %v304, 16
      %v326 = vor.u32 %v324, %v322
      %v328 = vshll.u32 %v305, 16
      %v330 = vrot.slane %v328, 1
      %v331 = vsel %vm311, %v326, %v330
      %v332 = vshrl.u32 %v305, 16
      %v334 = vor.u32 %v332, %v330
      %v336 = vshll.u32 %v306, 16
      %v338 = vrot.slane %v336, 1
      %v339 = vsel %vm311, %v334, %v338
      %v340 = vshrl.u32 %v306, 16
      %v342 = vor.u32 %v340, %v338
      %v344 = vshll.u32 %v307, 16
      %v346 = vrot.slane %v344, 1
      %v347 = vsel %vm311, %v342, %v346
      %v348 = vshrl.u32 %v307, 16
      %v350 = vor.u32 %v348, %v346
      %v352 = vshll.u32 %v310, 16
      %v354 = vrot.slane %v352, 1
      %v355 = vsel %vm311, %v350, %v354
      %356 = vrot.lane.b32.xlu0 %v323, 4
      %v357 = vpop.permute.xlu0 %356
      %358 = vrot.lane.b32.xlu0 %v331, 4
      %v359 = vpop.permute.xlu0 %358
      %360 = vrot.lane.b32.xlu0 %v339, 4
      %v361 = vpop.permute.xlu0 %360
      %362 = vrot.lane.b32.xlu0 %v347, 4
      %v363 = vpop.permute.xlu0 %362
      %364 = vrot.lane.b32.xlu0 %v355, 4
      %v365 = vpop.permute.xlu0 %364
      %v367 = vunpack.c.l.b16 %v272
      %v368 = vpack.c.b16 %v294, %v367
      %vm369 = vcmask 1046528
      %v370 = vrot.slane %v368, 1
      %v371 = vrot.slane %v304, 1
      %v372 = vsel %vm369, %v370, %v371
      %v373 = vrot.slane %v305, 1
      %v374 = vsel %vm369, %v371, %v373
      %v375 = vrot.slane %v306, 1
      %v376 = vsel %vm369, %v373, %v375
      %v377 = vrot.slane %v307, 1
      %v378 = vsel %vm369, %v375, %v377
      %v379 = vrot.slane %v310, 1
      %v380 = vsel %vm369, %v377, %v379
      %381 = vrot.lane.b32.xlu0 %v372, 8
      %v382 = vpop.permute.xlu0 %381
      %383 = vrot.lane.b32.xlu0 %v374, 8
      %v384 = vpop.permute.xlu0 %383
      %385 = vrot.lane.b32.xlu0 %v376, 8
      %v386 = vpop.permute.xlu0 %385
      %387 = vrot.lane.b32.xlu0 %v378, 8
      %v388 = vpop.permute.xlu0 %387
      %389 = vrot.lane.b32.xlu0 %v380, 8
      %v390 = vpop.permute.xlu0 %389
      %v394 = vunpack.c.l.b16 %v273
      %v395 = vunpack.c.l.b16 %v274
      %v396 = vunpack.c.l.b16 %v275
      %v397 = vpack.c.b16 %v295, %v394
      %v398 = vpack.c.b16 %v297, %v296
      %v399 = vpack.c.b16 %v299, %v298
      %v400 = vpack.c.b16 %v301, %v300
      %v401 = vpack.c.b16 %v395, %v302
      %v402 = vpack.c.b16 %v396, %v396
      %v403 = vrot.slane %v397, 1
      %v404 = vrot.slane %v398, 1
      %v405 = vsel %vm369, %v403, %v404
      %v406 = vrot.slane %v399, 1
      %v407 = vsel %vm369, %v404, %v406
      %v408 = vrot.slane %v400, 1
      %v409 = vsel %vm369, %v406, %v408
      %v410 = vrot.slane %v401, 1
      %v411 = vsel %vm369, %v408, %v410
      %v412 = vrot.slane %v402, 1
      %v413 = vsel %vm369, %v410, %v412
      %414 = vrot.lane.b32.xlu0 %v405, 12
      %v415 = vpop.permute.xlu0 %414
      %416 = vrot.lane.b32.xlu0 %v407, 12
      %v417 = vpop.permute.xlu0 %416
      %418 = vrot.lane.b32.xlu0 %v409, 12
      %v419 = vpop.permute.xlu0 %418
      %420 = vrot.lane.b32.xlu0 %v411, 12
      %v421 = vpop.permute.xlu0 %420
      %422 = vrot.lane.b32.xlu0 %v413, 12
      %v423 = vpop.permute.xlu0 %422
      %v425 = vunpack.c.l.b16 %v276
      %v426 = vpack.c.b16 %v425, %v425
      %vm427 = vsmask.f32 6400
      %v429 = vshrl.u32 %v397, 16
      %v431 = vrot.slane %v429, 1
      %v432 = vshll.u32 %v397, 16
      %v434 = vrot.slane %v432, 2
      %v435 = vor.u32 %v431, %v434
      %v437 = vshrl.u32 %v398, 16
      %v439 = vrot.slane %v437, 1
      %v440 = vshll.u32 %v398, 16
      %v442 = vrot.slane %v440, 2
      %v443 = vor.u32 %v439, %v442
      %v444 = vsel %vm427, %v435, %v443
      %v446 = vshrl.u32 %v399, 16
      %v448 = vrot.slane %v446, 1
      %v449 = vshll.u32 %v399, 16
      %v451 = vrot.slane %v449, 2
      %v452 = vor.u32 %v448, %v451
      %v453 = vsel %vm427, %v443, %v452
      %v455 = vshrl.u32 %v400, 16
      %v457 = vrot.slane %v455, 1
      %v458 = vshll.u32 %v400, 16
      %v460 = vrot.slane %v458, 2
      %v461 = vor.u32 %v457, %v460
      %v462 = vsel %vm427, %v452, %v461
      %v464 = vshrl.u32 %v401, 16
      %v466 = vrot.slane %v464, 1
      %v467 = vshll.u32 %v401, 16
      %v469 = vrot.slane %v467, 2
      %v470 = vor.u32 %v466, %v469
      %v471 = vsel %vm427, %v461, %v470
      %v473 = vshrl.u32 %v426, 16
      %v475 = vrot.slane %v473, 1
      %v476 = vshll.u32 %v426, 16
      %v478 = vrot.slane %v476, 2
      %v479 = vor.u32 %v475, %v478
      %v480 = vsel %vm427, %v470, %v479
      %481 = vrot.lane.b32.xlu0 %v444, 16
      %v482 = vpop.permute.xlu0 %481
      %483 = vrot.lane.b32.xlu0 %v453, 16
      %v484 = vpop.permute.xlu0 %483
      %485 = vrot.lane.b32.xlu0 %v462, 16
      %v486 = vpop.permute.xlu0 %485
      %487 = vrot.lane.b32.xlu0 %v471, 16
      %v488 = vpop.permute.xlu0 %487
      %489 = vrot.lane.b32.xlu0 %v480, 16
      %v490 = vpop.permute.xlu0 %489
      %v492 = vunpack.c.l.b16 %v277
      %v493 = vpack.c.b16 %v295, %v492
      %vm494 = vcmask 1045504
      %v495 = vrot.slane %v493, 2
      %v496 = vrot.slane %v398, 2
      %v497 = vsel %vm494, %v495, %v496
      %v498 = vrot.slane %v399, 2
      %v499 = vsel %vm494, %v496, %v498
      %v500 = vrot.slane %v400, 2
      %v501 = vsel %vm494, %v498, %v500
      %v502 = vrot.slane %v401, 2
      %v503 = vsel %vm494, %v500, %v502
      %v504 = vrot.slane %v426, 2
      %v505 = vsel %vm494, %v502, %v504
      %506 = vrot.lane.b32.xlu0 %v497, 20
      %v507 = vpop.permute.xlu0 %506
      %508 = vrot.lane.b32.xlu0 %v499, 20
      %v509 = vpop.permute.xlu0 %508
      %510 = vrot.lane.b32.xlu0 %v501, 20
      %v511 = vpop.permute.xlu0 %510
      %512 = vrot.lane.b32.xlu0 %v503, 20
      %v513 = vpop.permute.xlu0 %512
      %514 = vrot.lane.b32.xlu0 %v505, 20
      %v515 = vpop.permute.xlu0 %514
      %v519 = vunpack.c.l.b16 %v278
      %v520 = vunpack.c.l.b16 %v279
      %v521 = vunpack.c.l.b16 %v280
      %v522 = vpack.c.b16 %v296, %v519
      %v523 = vpack.c.b16 %v520, %v395
      %v524 = vpack.c.b16 %v521, %v521
      %v525 = vrot.slane %v522, 2
      %v526 = vrot.slane %v305, 2
      %v527 = vsel %vm494, %v525, %v526
      %v528 = vrot.slane %v306, 2
      %v529 = vsel %vm494, %v526, %v528
      %v530 = vrot.slane %v307, 2
      %v531 = vsel %vm494, %v528, %v530
      %v532 = vrot.slane %v523, 2
      %v533 = vsel %vm494, %v530, %v532
      %v534 = vrot.slane %v524, 2
      %v535 = vsel %vm494, %v532, %v534
      %536 = vrot.lane.b32.xlu0 %v527, 24
      %v537 = vpop.permute.xlu0 %536
      %538 = vrot.lane.b32.xlu0 %v529, 24
      %v539 = vpop.permute.xlu0 %538
      %540 = vrot.lane.b32.xlu0 %v531, 24
      %v541 = vpop.permute.xlu0 %540
      %542 = vrot.lane.b32.xlu0 %v533, 24
      %v543 = vpop.permute.xlu0 %542
      %544 = vrot.lane.b32.xlu0 %v535, 24
      %v545 = vpop.permute.xlu0 %544
      %v547 = vunpack.c.l.b16 %v281
      %v548 = vpack.c.b16 %v547, %v547
      %vm549 = vsmask.f32 5376
      %v551 = vshrl.u32 %v522, 16
      %v553 = vrot.slane %v551, 2
      %v554 = vshll.u32 %v522, 16
      %v556 = vrot.slane %v554, 3
      %v557 = vor.u32 %v553, %v556
      %v558 = vrot.slane %v332, 2
      %v559 = vrot.slane %v328, 3
      %v560 = vor.u32 %v558, %v559
      %v561 = vsel %vm549, %v557, %v560
      %v562 = vrot.slane %v340, 2
      %v563 = vrot.slane %v336, 3
      %v564 = vor.u32 %v562, %v563
      %v565 = vsel %vm549, %v560, %v564
      %v566 = vrot.slane %v348, 2
      %v567 = vrot.slane %v344, 3
      %v568 = vor.u32 %v566, %v567
      %v569 = vsel %vm549, %v564, %v568
      %v571 = vshrl.u32 %v523, 16
      %v573 = vrot.slane %v571, 2
      %v574 = vshll.u32 %v523, 16
      %v576 = vrot.slane %v574, 3
      %v577 = vor.u32 %v573, %v576
      %v578 = vsel %vm549, %v568, %v577
      %v580 = vshrl.u32 %v548, 16
      %v582 = vrot.slane %v580, 2
      %v583 = vshll.u32 %v548, 16
      %v585 = vrot.slane %v583, 3
      %v586 = vor.u32 %v582, %v585
      %v587 = vsel %vm549, %v577, %v586
      %588 = vrot.lane.b32.xlu0 %v561, 28
      %v589 = vpop.permute.xlu0 %588
      %590 = vrot.lane.b32.xlu0 %v565, 28
      %v591 = vpop.permute.xlu0 %590
      %592 = vrot.lane.b32.xlu0 %v569, 28
      %v593 = vpop.permute.xlu0 %592
      %594 = vrot.lane.b32.xlu0 %v578, 28
      %v595 = vpop.permute.xlu0 %594
      %596 = vrot.lane.b32.xlu0 %v587, 28
      %v597 = vpop.permute.xlu0 %596
      %v599 = vunpack.c.l.b16 %v282
      %v600 = vpack.c.b16 %v296, %v599
      %vm601 = vcmask 1044480
      %v602 = vrot.slane %v600, 3
      %v603 = vrot.slane %v305, 3
      %v604 = vsel %vm601, %v602, %v603
      %v605 = vrot.slane %v306, 3
      %v606 = vsel %vm601, %v603, %v605
      %v607 = vrot.slane %v307, 3
      %v608 = vsel %vm601, %v605, %v607
      %v609 = vrot.slane %v523, 3
      %v610 = vsel %vm601, %v607, %v609
      %v611 = vrot.slane %v548, 3
      %v612 = vsel %vm601, %v609, %v611
      %613 = vrot.lane.b32.xlu0 %v604, 32
      %v614 = vpop.permute.xlu0 %613
      %615 = vrot.lane.b32.xlu0 %v606, 32
      %v616 = vpop.permute.xlu0 %615
      %617 = vrot.lane.b32.xlu0 %v608, 32
      %v618 = vpop.permute.xlu0 %617
      %619 = vrot.lane.b32.xlu0 %v610, 32
      %v620 = vpop.permute.xlu0 %619
      %621 = vrot.lane.b32.xlu0 %v612, 32
      %v622 = vpop.permute.xlu0 %621
      %vm623 = vcmask 31744
      %v625 = vsel %vm623, %v303, %v357
      %v627 = vsel %vm623, %v304, %v359
      %v629 = vsel %vm623, %v305, %v361
      %v631 = vsel %vm623, %v306, %v363
      %v633 = vsel %vm623, %v307, %v365
      %vm634 = vcmask 64512
      %v636 = vsel %vm634, %v625, %v382
      %v638 = vsel %vm634, %v627, %v384
      %v640 = vsel %vm634, %v629, %v386
      %v642 = vsel %vm634, %v631, %v388
      %v644 = vsel %vm634, %v633, %v390
      %vm645 = vcmask 97280
      %v647 = vsel %vm645, %v636, %v415
      %v649 = vsel %vm645, %v638, %v417
      %v651 = vsel %vm645, %v640, %v419
      %v653 = vsel %vm645, %v642, %v421
      %v655 = vsel %vm645, %v644, %v423
      %vm656 = vcmask 130048
      %v658 = vsel %vm656, %v647, %v482
      %v660 = vsel %vm656, %v649, %v484
      %v662 = vsel %vm656, %v651, %v486
      %v664 = vsel %vm656, %v653, %v488
      %v666 = vsel %vm656, %v655, %v490
      %vm667 = vcmask 162816
      %v669 = vsel %vm667, %v658, %v507
      %v671 = vsel %vm667, %v660, %v509
      %v673 = vsel %vm667, %v662, %v511
      %v675 = vsel %vm667, %v664, %v513
      %v677 = vsel %vm667, %v666, %v515
      %vm678 = vcmask 195584
      %v680 = vsel %vm678, %v669, %v537
      %v682 = vsel %vm678, %v671, %v539
      %v684 = vsel %vm678, %v673, %v541
      %v686 = vsel %vm678, %v675, %v543
      %v688 = vsel %vm678, %v677, %v545
      %vm689 = vcmask 228352
      %v691 = vsel %vm689, %v680, %v589
      %v693 = vsel %vm689, %v682, %v591
      %v695 = vsel %vm689, %v684, %v593
      %v697 = vsel %vm689, %v686, %v595
      %v699 = vsel %vm689, %v688, %v597
      %vm700 = vcmask 261120
      %v702 = vsel %vm700, %v691, %v614
      %v704 = vsel %vm700, %v693, %v616
      %v706 = vsel %vm700, %v695, %v618
      %v708 = vsel %vm700, %v697, %v620
      %v710 = vsel %vm700, %v699, %v622
      %v711 = vld [vmem:[%s1] sm:$0xf]
      %v712 = vld [vmem:[%s1 + $0x4] sm:$0xf]
      %v713 = vld [vmem:[%s1 + $0x8] sm:$0xf]
      %v714 = vld [vmem:[%s1 + $0xc] sm:$0xf]
      %v715 = vld [vmem:[%s1 + $0x10] sm:$0x3]
      %s716 = sadd.s32 %s21, 1
      %s717 = smul.u32 %s716, 13
      %s718 = smul.addr %s717, 4
      %s719 = scalar_lea.vmem %s233, %s718
      %v720 = vld [vmem:[%s719] sm:$0xf]
      %v721 = vld [vmem:[%s719 + $0x4] sm:$0xf]
      %v722 = vld [vmem:[%s719 + $0x8] sm:$0xf]
      %v723 = vld [vmem:[%s719 + $0xc] sm:$0xf]
      %v724 = vld [vmem:[%s719 + $0x10] sm:$0xf]
      %v725 = vld [vmem:[%s719 + $0x14] sm:$0xf]
      %v726 = vld [vmem:[%s719 + $0x18] sm:$0xf]
      %v727 = vld [vmem:[%s719 + $0x1c] sm:$0xf]
      %v728 = vld [vmem:[%s719 + $0x20] sm:$0xf]
      %v729 = vld [vmem:[%s719 + $0x24] sm:$0xf]
      %v730 = vld [vmem:[%s719 + $0x28] sm:$0x1]
      %v731 = vld [vmem:[%s719] sm:$0xe]
      %v732 = vld [vmem:[%s719 + $0x4] sm:$0xe]
      %v733 = vld [vmem:[%s719 + $0x28] sm:$0xf]
      %v734 = vld [vmem:[%s719 + $0x2c] sm:$0x1]
      %v735 = vld [vmem:[%s719 + $0x2c] sm:$0x3]
      %v736 = vld [vmem:[%s719 + $0x4] sm:$0xc]
      %v737 = vld [vmem:[%s719 + $0x8] sm:$0xc]
      %v738 = vld [vmem:[%s719 + $0x2c] sm:$0xf]
      %v739 = vld [vmem:[%s719 + $0x30] sm:$0x3]
      %v740 = vld [vmem:[%s719 + $0x30] sm:$0x7]
      %v741 = vld [vmem:[%s719 + $0x8] sm:$0x8]
      %v752 = vunpack.c.l.b16 %v720
      %v753 = vunpack.c.l.b16 %v721
      %v754 = vunpack.c.l.b16 %v722
      %v755 = vunpack.c.l.b16 %v723
      %v756 = vunpack.c.l.b16 %v724
      %v757 = vunpack.c.l.b16 %v725
      %v758 = vunpack.c.l.b16 %v726
      %v759 = vunpack.c.l.b16 %v727
      %v760 = vunpack.c.l.b16 %v728
      %v761 = vunpack.c.l.b16 %v729
      %v762 = vpack.c.b16 %v753, %v752
      %v763 = vpack.c.b16 %v755, %v754
      %v764 = vpack.c.b16 %v757, %v756
      %v765 = vpack.c.b16 %v759, %v758
      %v766 = vpack.c.b16 %v761, %v760
      %v768 = vunpack.c.l.b16 %v730
      %v769 = vpack.c.b16 %v768, %v768
      %v771 = vshrl.u32 %v762, 16
      %v773 = vshll.u32 %v762, 16
      %v775 = vrot.slane %v773, 1
      %v776 = vor.u32 %v771, %v775
      %v778 = vshll.u32 %v763, 16
      %v780 = vrot.slane %v778, 1
      %v781 = vsel %vm311, %v776, %v780
      %v782 = vshrl.u32 %v763, 16
      %v784 = vor.u32 %v782, %v780
      %v786 = vshll.u32 %v764, 16
      %v788 = vrot.slane %v786, 1
      %v789 = vsel %vm311, %v784, %v788
      %v790 = vshrl.u32 %v764, 16
      %v792 = vor.u32 %v790, %v788
      %v794 = vshll.u32 %v765, 16
      %v796 = vrot.slane %v794, 1
      %v797 = vsel %vm311, %v792, %v796
      %v798 = vshrl.u32 %v765, 16
      %v800 = vor.u32 %v798, %v796
      %v802 = vshll.u32 %v766, 16
      %v804 = vrot.slane %v802, 1
      %v805 = vsel %vm311, %v800, %v804
      %v806 = vshrl.u32 %v766, 16
      %v808 = vor.u32 %v806, %v804
      %v810 = vshll.u32 %v769, 16
      %v812 = vrot.slane %v810, 1
      %v813 = vsel %vm311, %v808, %v812
      %814 = vrot.lane.b32.xlu0 %v781, 4
      %v815 = vpop.permute.xlu0 %814
      %816 = vrot.lane.b32.xlu0 %v789, 4
      %v817 = vpop.permute.xlu0 %816
      %818 = vrot.lane.b32.xlu0 %v797, 4
      %v819 = vpop.permute.xlu0 %818
      %820 = vrot.lane.b32.xlu0 %v805, 4
      %v821 = vpop.permute.xlu0 %820
      %822 = vrot.lane.b32.xlu0 %v813, 4
      %v823 = vpop.permute.xlu0 %822
      %v825 = vunpack.c.l.b16 %v731
      %v826 = vpack.c.b16 %v753, %v825
      %v827 = vrot.slane %v826, 1
      %v828 = vrot.slane %v763, 1
      %v829 = vsel %vm369, %v827, %v828
      %v830 = vrot.slane %v764, 1
      %v831 = vsel %vm369, %v828, %v830
      %v832 = vrot.slane %v765, 1
      %v833 = vsel %vm369, %v830, %v832
      %v834 = vrot.slane %v766, 1
      %v835 = vsel %vm369, %v832, %v834
      %v836 = vrot.slane %v769, 1
      %v837 = vsel %vm369, %v834, %v836
      %838 = vrot.lane.b32.xlu0 %v829, 8
      %v839 = vpop.permute.xlu0 %838
      %840 = vrot.lane.b32.xlu0 %v831, 8
      %v841 = vpop.permute.xlu0 %840
      %842 = vrot.lane.b32.xlu0 %v833, 8
      %v843 = vpop.permute.xlu0 %842
      %844 = vrot.lane.b32.xlu0 %v835, 8
      %v845 = vpop.permute.xlu0 %844
      %846 = vrot.lane.b32.xlu0 %v837, 8
      %v847 = vpop.permute.xlu0 %846
      %v851 = vunpack.c.l.b16 %v732
      %v852 = vunpack.c.l.b16 %v733
      %v853 = vunpack.c.l.b16 %v734
      %v854 = vpack.c.b16 %v754, %v851
      %v855 = vpack.c.b16 %v756, %v755
      %v856 = vpack.c.b16 %v758, %v757
      %v857 = vpack.c.b16 %v760, %v759
      %v858 = vpack.c.b16 %v852, %v761
      %v859 = vpack.c.b16 %v853, %v853
      %v860 = vrot.slane %v854, 1
      %v861 = vrot.slane %v855, 1
      %v862 = vsel %vm369, %v860, %v861
      %v863 = vrot.slane %v856, 1
      %v864 = vsel %vm369, %v861, %v863
      %v865 = vrot.slane %v857, 1
      %v866 = vsel %vm369, %v863, %v865
      %v867 = vrot.slane %v858, 1
      %v868 = vsel %vm369, %v865, %v867
      %v869 = vrot.slane %v859, 1
      %v870 = vsel %vm369, %v867, %v869
      %871 = vrot.lane.b32.xlu0 %v862, 12
      %v872 = vpop.permute.xlu0 %871
      %873 = vrot.lane.b32.xlu0 %v864, 12
      %v874 = vpop.permute.xlu0 %873
      %875 = vrot.lane.b32.xlu0 %v866, 12
      %v876 = vpop.permute.xlu0 %875
      %877 = vrot.lane.b32.xlu0 %v868, 12
      %v878 = vpop.permute.xlu0 %877
      %879 = vrot.lane.b32.xlu0 %v870, 12
      %v880 = vpop.permute.xlu0 %879
      %v882 = vunpack.c.l.b16 %v735
      %v883 = vpack.c.b16 %v882, %v882
      %v885 = vshrl.u32 %v854, 16
      %v887 = vrot.slane %v885, 1
      %v888 = vshll.u32 %v854, 16
      %v890 = vrot.slane %v888, 2
      %v891 = vor.u32 %v887, %v890
      %v893 = vshrl.u32 %v855, 16
      %v895 = vrot.slane %v893, 1
      %v896 = vshll.u32 %v855, 16
      %v898 = vrot.slane %v896, 2
      %v899 = vor.u32 %v895, %v898
      %v900 = vsel %vm427, %v891, %v899
      %v902 = vshrl.u32 %v856, 16
      %v904 = vrot.slane %v902, 1
      %v905 = vshll.u32 %v856, 16
      %v907 = vrot.slane %v905, 2
      %v908 = vor.u32 %v904, %v907
      %v909 = vsel %vm427, %v899, %v908
      %v911 = vshrl.u32 %v857, 16
      %v913 = vrot.slane %v911, 1
      %v914 = vshll.u32 %v857, 16
      %v916 = vrot.slane %v914, 2
      %v917 = vor.u32 %v913, %v916
      %v918 = vsel %vm427, %v908, %v917
      %v920 = vshrl.u32 %v858, 16
      %v922 = vrot.slane %v920, 1
      %v923 = vshll.u32 %v858, 16
      %v925 = vrot.slane %v923, 2
      %v926 = vor.u32 %v922, %v925
      %v927 = vsel %vm427, %v917, %v926
      %v929 = vshrl.u32 %v883, 16
      %v931 = vrot.slane %v929, 1
      %v932 = vshll.u32 %v883, 16
      %v934 = vrot.slane %v932, 2
      %v935 = vor.u32 %v931, %v934
      %v936 = vsel %vm427, %v926, %v935
      %937 = vrot.lane.b32.xlu0 %v900, 16
      %v938 = vpop.permute.xlu0 %937
      %939 = vrot.lane.b32.xlu0 %v909, 16
      %v940 = vpop.permute.xlu0 %939
      %941 = vrot.lane.b32.xlu0 %v918, 16
      %v942 = vpop.permute.xlu0 %941
      %943 = vrot.lane.b32.xlu0 %v927, 16
      %v944 = vpop.permute.xlu0 %943
      %945 = vrot.lane.b32.xlu0 %v936, 16
      %v946 = vpop.permute.xlu0 %945
      %v948 = vunpack.c.l.b16 %v736
      %v949 = vpack.c.b16 %v754, %v948
      %v950 = vrot.slane %v949, 2
      %v951 = vrot.slane %v855, 2
      %v952 = vsel %vm494, %v950, %v951
      %v953 = vrot.slane %v856, 2
      %v954 = vsel %vm494, %v951, %v953
      %v955 = vrot.slane %v857, 2
      %v956 = vsel %vm494, %v953, %v955
      %v957 = vrot.slane %v858, 2
      %v958 = vsel %vm494, %v955, %v957
      %v959 = vrot.slane %v883, 2
      %v960 = vsel %vm494, %v957, %v959
      %961 = vrot.lane.b32.xlu0 %v952, 20
      %v962 = vpop.permute.xlu0 %961
      %963 = vrot.lane.b32.xlu0 %v954, 20
      %v964 = vpop.permute.xlu0 %963
      %965 = vrot.lane.b32.xlu0 %v956, 20
      %v966 = vpop.permute.xlu0 %965
      %967 = vrot.lane.b32.xlu0 %v958, 20
      %v968 = vpop.permute.xlu0 %967
      %969 = vrot.lane.b32.xlu0 %v960, 20
      %v970 = vpop.permute.xlu0 %969
      %v974 = vunpack.c.l.b16 %v737
      %v975 = vunpack.c.l.b16 %v738
      %v976 = vunpack.c.l.b16 %v739
      %v977 = vpack.c.b16 %v755, %v974
      %v978 = vpack.c.b16 %v975, %v852
      %v979 = vpack.c.b16 %v976, %v976
      %v980 = vrot.slane %v977, 2
      %v981 = vrot.slane %v764, 2
      %v982 = vsel %vm494, %v980, %v981
      %v983 = vrot.slane %v765, 2
      %v984 = vsel %vm494, %v981, %v983
      %v985 = vrot.slane %v766, 2
      %v986 = vsel %vm494, %v983, %v985
      %v987 = vrot.slane %v978, 2
      %v988 = vsel %vm494, %v985, %v987
      %v989 = vrot.slane %v979, 2
      %v990 = vsel %vm494, %v987, %v989
      %991 = vrot.lane.b32.xlu0 %v982, 24
      %v992 = vpop.permute.xlu0 %991
      %993 = vrot.lane.b32.xlu0 %v984, 24
      %v994 = vpop.permute.xlu0 %993
      %995 = vrot.lane.b32.xlu0 %v986, 24
      %v996 = vpop.permute.xlu0 %995
      %997 = vrot.lane.b32.xlu0 %v988, 24
      %v998 = vpop.permute.xlu0 %997
      %999 = vrot.lane.b32.xlu0 %v990, 24
      %v1000 = vpop.permute.xlu0 %999
      %v1002 = vunpack.c.l.b16 %v740
      %v1003 = vpack.c.b16 %v1002, %v1002
      %v1005 = vshrl.u32 %v977, 16
      %v1007 = vrot.slane %v1005, 2
      %v1008 = vshll.u32 %v977, 16
      %v1010 = vrot.slane %v1008, 3
      %v1011 = vor.u32 %v1007, %v1010
      %v1012 = vrot.slane %v790, 2
      %v1013 = vrot.slane %v786, 3
      %v1014 = vor.u32 %v1012, %v1013
      %v1015 = vsel %vm549, %v1011, %v1014
      %v1016 = vrot.slane %v798, 2
      %v1017 = vrot.slane %v794, 3
      %v1018 = vor.u32 %v1016, %v1017
      %v1019 = vsel %vm549, %v1014, %v1018
      %v1020 = vrot.slane %v806, 2
      %v1021 = vrot.slane %v802, 3
      %v1022 = vor.u32 %v1020, %v1021
      %v1023 = vsel %vm549, %v1018, %v1022
      %v1025 = vshrl.u32 %v978, 16
      %v1027 = vrot.slane %v1025, 2
      %v1028 = vshll.u32 %v978, 16
      %v1030 = vrot.slane %v1028, 3
      %v1031 = vor.u32 %v1027, %v1030
      %v1032 = vsel %vm549, %v1022, %v1031
      %v1034 = vshrl.u32 %v1003, 16
      %v1036 = vrot.slane %v1034, 2
      %v1037 = vshll.u32 %v1003, 16
      %v1039 = vrot.slane %v1037, 3
      %v1040 = vor.u32 %v1036, %v1039
      %v1041 = vsel %vm549, %v1031, %v1040
      %1042 = vrot.lane.b32.xlu0 %v1015, 28
      %v1043 = vpop.permute.xlu0 %1042
      %1044 = vrot.lane.b32.xlu0 %v1019, 28
      %v1045 = vpop.permute.xlu0 %1044
      %1046 = vrot.lane.b32.xlu0 %v1023, 28
      %v1047 = vpop.permute.xlu0 %1046
      %1048 = vrot.lane.b32.xlu0 %v1032, 28
      %v1049 = vpop.permute.xlu0 %1048
      %1050 = vrot.lane.b32.xlu0 %v1041, 28
      %v1051 = vpop.permute.xlu0 %1050
      %v1053 = vunpack.c.l.b16 %v741
      %v1054 = vpack.c.b16 %v755, %v1053
      %v1055 = vrot.slane %v1054, 3
      %v1056 = vrot.slane %v764, 3
      %v1057 = vsel %vm601, %v1055, %v1056
      %v1058 = vrot.slane %v765, 3
      %v1059 = vsel %vm601, %v1056, %v1058
      %v1060 = vrot.slane %v766, 3
      %v1061 = vsel %vm601, %v1058, %v1060
      %v1062 = vrot.slane %v978, 3
      %v1063 = vsel %vm601, %v1060, %v1062
      %v1064 = vrot.slane %v1003, 3
      %v1065 = vsel %vm601, %v1062, %v1064
      %1066 = vrot.lane.b32.xlu0 %v1057, 32
      %v1067 = vpop.permute.xlu0 %1066
      %1068 = vrot.lane.b32.xlu0 %v1059, 32
      %v1069 = vpop.permute.xlu0 %1068
      %1070 = vrot.lane.b32.xlu0 %v1061, 32
      %v1071 = vpop.permute.xlu0 %1070
      %1072 = vrot.lane.b32.xlu0 %v1063, 32
      %v1073 = vpop.permute.xlu0 %1072
      %1074 = vrot.lane.b32.xlu0 %v1065, 32
      %v1075 = vpop.permute.xlu0 %1074
      %v1077 = vsel %vm623, %v762, %v815
      %v1079 = vsel %vm623, %v763, %v817
      %v1081 = vsel %vm623, %v764, %v819
      %v1083 = vsel %vm623, %v765, %v821
      %v1085 = vsel %vm623, %v766, %v823
      %v1087 = vsel %vm634, %v1077, %v839
      %v1089 = vsel %vm634, %v1079, %v841
      %v1091 = vsel %vm634, %v1081, %v843
      %v1093 = vsel %vm634, %v1083, %v845
      %v1095 = vsel %vm634, %v1085, %v847
      %v1097 = vsel %vm645, %v1087, %v872
      %v1099 = vsel %vm645, %v1089, %v874
      %v1101 = vsel %vm645, %v1091, %v876
      %v1103 = vsel %vm645, %v1093, %v878
      %v1105 = vsel %vm645, %v1095, %v880
      %v1107 = vsel %vm656, %v1097, %v938
      %v1109 = vsel %vm656, %v1099, %v940
      %v1111 = vsel %vm656, %v1101, %v942
      %v1113 = vsel %vm656, %v1103, %v944
      %v1115 = vsel %vm656, %v1105, %v946
      %v1117 = vsel %vm667, %v1107, %v962
      %v1119 = vsel %vm667, %v1109, %v964
      %v1121 = vsel %vm667, %v1111, %v966
      %v1123 = vsel %vm667, %v1113, %v968
      %v1125 = vsel %vm667, %v1115, %v970
      %v1127 = vsel %vm678, %v1117, %v992
      %v1129 = vsel %vm678, %v1119, %v994
      %v1131 = vsel %vm678, %v1121, %v996
      %v1133 = vsel %vm678, %v1123, %v998
      %v1135 = vsel %vm678, %v1125, %v1000
      %v1137 = vsel %vm689, %v1127, %v1043
      %v1139 = vsel %vm689, %v1129, %v1045
      %v1141 = vsel %vm689, %v1131, %v1047
      %v1143 = vsel %vm689, %v1133, %v1049
      %v1145 = vsel %vm689, %v1135, %v1051
      %v1147 = vsel %vm700, %v1137, %v1067
      %v1149 = vsel %vm700, %v1139, %v1069
      %v1151 = vsel %vm700, %v1141, %v1071
      %v1153 = vsel %vm700, %v1143, %v1073
      %v1155 = vsel %vm700, %v1145, %v1075
      %s1156 = scalar_lea.vmem %s1, 20
      %v1157 = vld [vmem:[%s1156] sm:$0xf]
      %v1158 = vld [vmem:[%s1156 + $0x4] sm:$0xf]
      %v1159 = vld [vmem:[%s1156 + $0x8] sm:$0xf]
      %v1160 = vld [vmem:[%s1156 + $0xc] sm:$0xf]
      %v1161 = vld [vmem:[%s1156 + $0x10] sm:$0x3]
      %v1167 = vunpack.c.l.b16 %v1157
      %v1168 = vunpack.c.l.b16 %v1158
      %v1169 = vunpack.c.l.b16 %v1159
      %v1170 = vunpack.c.l.b16 %v1160
      %v1171 = vunpack.c.l.b16 %v1161
      %v1172 = vpack.c.b16 %v1168, %v1167
      %v1173 = vpack.c.b16 %v1170, %v1169
      %v1174 = vpack.c.b16 %v1171, %v1171
      %vm1177 = vcmask 293888
      %v1178 = vsel %vm1177, %v1147, 0
      %v1180 = vsel %vm1177, %v1149, 0
      %v1182 = vsel %vm1177, %v1151, 0
      %v1184 = vsel %vm1177, %v1153, 0
      %v1186 = vsel %vm1177, %v1155, 0
      %vm1188 = vcmask 1041408
      %v1190 = vsel %vm1188, %v1174, 0
      %1192 = vmatpush.bf16.msra.mxu0 0
      %1193 = vmatpush.bf16.msra.mxu0 0
      %1194 = vmatpush.bf16.msra.mxu0 0
      %1195 = vmatpush.bf16.msra.mxu0 0
      %1196 = vmatpush.bf16.msra.mxu0 0
      %1197 = vmatpush.bf16.msra.mxu0 %v1190
      %1198 = vmatpush.bf16.msra.mxu0 %v1173
      %1199 = vmatpush.bf16.msra.mxu0 %v1172
      %1200 = vmatmul.bf16.gmra.mxu0 %v1178
      %v1201 = vpop.f32.mrf.mxu0
      %v1202 = vadd.f32 0.0, %v1201
      %v1203 = vpop.f32.mrf.mxu0
      %v1204 = vadd.f32 0.0, %v1203
      %1205 = vmatmul.bf16.gmra.mxu0 %v1180
      %v1206 = vpop.f32.mrf.mxu0
      %v1207 = vadd.f32 0.0, %v1206
      %v1208 = vpop.f32.mrf.mxu0
      %v1209 = vadd.f32 0.0, %v1208
      %1210 = vmatmul.bf16.gmra.mxu0 %v1182
      %v1211 = vpop.f32.mrf.mxu0
      %v1212 = vadd.f32 0.0, %v1211
      %v1213 = vpop.f32.mrf.mxu0
      %v1214 = vadd.f32 0.0, %v1213
      %1215 = vmatmul.bf16.gmra.mxu0 %v1184
      %v1216 = vpop.f32.mrf.mxu0
      %v1217 = vadd.f32 0.0, %v1216
      %v1218 = vpop.f32.mrf.mxu0
      %v1219 = vadd.f32 0.0, %v1218
      %1220 = vmatmul.bf16.gmra.mxu0 %v1186
      %v1221 = vpop.f32.mrf.mxu0
      %v1222 = vadd.f32 0.0, %v1221
      %v1223 = vpop.f32.mrf.mxu0
      %v1224 = vadd.f32 0.0, %v1223
      %1225 = vdwg.mxu0
      %v1231 = vunpack.c.l.b16 %v711
      %v1232 = vunpack.c.l.b16 %v712
      %v1233 = vunpack.c.l.b16 %v713
      %v1234 = vunpack.c.l.b16 %v714
      %v1235 = vunpack.c.l.b16 %v715
      %v1236 = vpack.c.b16 %v1232, %v1231
      %v1237 = vpack.c.b16 %v1234, %v1233
      %v1238 = vpack.c.b16 %v1235, %v1235
      %v1241 = vsel %vm1177, %v702, 0
      %v1243 = vsel %vm1177, %v704, 0
      %v1245 = vsel %vm1177, %v706, 0
      %v1247 = vsel %vm1177, %v708, 0
      %v1249 = vsel %vm1177, %v710, 0
      %v1252 = vsel %vm1188, %v1238, 0
      %1254 = vmatpush.bf16.msra.mxu0 0
      %1255 = vmatpush.bf16.msra.mxu0 0
      %1256 = vmatpush.bf16.msra.mxu0 0
      %1257 = vmatpush.bf16.msra.mxu0 0
      %1258 = vmatpush.bf16.msra.mxu0 0
      %1259 = vmatpush.bf16.msra.mxu0 %v1252
      %1260 = vmatpush.bf16.msra.mxu0 %v1237
      %1261 = vmatpush.bf16.msra.mxu0 %v1236
      %1262 = vmatmul.bf16.gmra.mxu0 %v1241
      %v1263 = vpop.f32.mrf.mxu0
      %v1264 = vadd.f32 %v1202, %v1263
      %v1265 = vpop.f32.mrf.mxu0
      %v1266 = vadd.f32 %v1204, %v1265
      %1267 = vmatmul.bf16.gmra.mxu0 %v1243
      %v1268 = vpop.f32.mrf.mxu0
      %v1269 = vadd.f32 %v1207, %v1268
      %v1270 = vpop.f32.mrf.mxu0
      %v1271 = vadd.f32 %v1209, %v1270
      %1272 = vmatmul.bf16.gmra.mxu0 %v1245
      %v1273 = vpop.f32.mrf.mxu0
      %v1274 = vadd.f32 %v1212, %v1273
      %v1275 = vpop.f32.mrf.mxu0
      %v1276 = vadd.f32 %v1214, %v1275
      %1277 = vmatmul.bf16.gmra.mxu0 %v1247
      %v1278 = vpop.f32.mrf.mxu0
      %v1279 = vadd.f32 %v1217, %v1278
      %v1280 = vpop.f32.mrf.mxu0
      %v1281 = vadd.f32 %v1219, %v1280
      %1282 = vmatmul.bf16.gmra.mxu0 %v1249
      %v1283 = vpop.f32.mrf.mxu0
      %v1284 = vadd.f32 %v1222, %v1283
      %v1285 = vpop.f32.mrf.mxu0
      %v1286 = vadd.f32 %v1224, %v1285
      %1287 = vdwg.mxu0
      %s1288 = sadd.s32 %s21, 2
      %s1289 = smul.u32 %s1288, 13
      %s1290 = smul.addr %s1289, 4
      %s1291 = scalar_lea.vmem %s233, %s1290
      %v1292 = vld [vmem:[%s1291] sm:$0xf]
      %v1293 = vld [vmem:[%s1291 + $0x4] sm:$0xf]
      %v1294 = vld [vmem:[%s1291 + $0x8] sm:$0xf]
      %v1295 = vld [vmem:[%s1291 + $0xc] sm:$0xf]
      %v1296 = vld [vmem:[%s1291 + $0x10] sm:$0xf]
      %v1297 = vld [vmem:[%s1291 + $0x14] sm:$0xf]
      %v1298 = vld [vmem:[%s1291 + $0x18] sm:$0xf]
      %v1299 = vld [vmem:[%s1291 + $0x1c] sm:$0xf]
      %v1300 = vld [vmem:[%s1291 + $0x20] sm:$0xf]
      %v1301 = vld [vmem:[%s1291 + $0x24] sm:$0xf]
      %v1302 = vld [vmem:[%s1291 + $0x28] sm:$0x1]
      %v1303 = vld [vmem:[%s1291] sm:$0xe]
      %v1304 = vld [vmem:[%s1291 + $0x4] sm:$0xe]
      %v1305 = vld [vmem:[%s1291 + $0x28] sm:$0xf]
      %v1306 = vld [vmem:[%s1291 + $0x2c] sm:$0x1]
      %v1307 = vld [vmem:[%s1291 + $0x2c] sm:$0x3]
      %v1308 = vld [vmem:[%s1291 + $0x4] sm:$0xc]
      %v1309 = vld [vmem:[%s1291 + $0x8] sm:$0xc]
      %v1310 = vld [vmem:[%s1291 + $0x2c] sm:$0xf]
      %v1311 = vld [vmem:[%s1291 + $0x30] sm:$0x3]
      %v1312 = vld [vmem:[%s1291 + $0x30] sm:$0x7]
      %v1313 = vld [vmem:[%s1291 + $0x8] sm:$0x8]
      %v1324 = vunpack.c.l.b16 %v1292
      %v1325 = vunpack.c.l.b16 %v1293
      %v1326 = vunpack.c.l.b16 %v1294
      %v1327 = vunpack.c.l.b16 %v1295
      %v1328 = vunpack.c.l.b16 %v1296
      %v1329 = vunpack.c.l.b16 %v1297
      %v1330 = vunpack.c.l.b16 %v1298
      %v1331 = vunpack.c.l.b16 %v1299
      %v1332 = vunpack.c.l.b16 %v1300
      %v1333 = vunpack.c.l.b16 %v1301
      %v1334 = vpack.c.b16 %v1325, %v1324
      %v1335 = vpack.c.b16 %v1327, %v1326
      %v1336 = vpack.c.b16 %v1329, %v1328
      %v1337 = vpack.c.b16 %v1331, %v1330
      %v1338 = vpack.c.b16 %v1333, %v1332
      %v1340 = vunpack.c.l.b16 %v1302
      %v1341 = vpack.c.b16 %v1340, %v1340
      %v1343 = vshrl.u32 %v1334, 16
      %v1345 = vshll.u32 %v1334, 16
      %v1347 = vrot.slane %v1345, 1
      %v1348 = vor.u32 %v1343, %v1347
      %v1350 = vshll.u32 %v1335, 16
      %v1352 = vrot.slane %v1350, 1
      %v1353 = vsel %vm311, %v1348, %v1352
      %v1354 = vshrl.u32 %v1335, 16
      %v1356 = vor.u32 %v1354, %v1352
      %v1358 = vshll.u32 %v1336, 16
      %v1360 = vrot.slane %v1358, 1
      %v1361 = vsel %vm311, %v1356, %v1360
      %v1362 = vshrl.u32 %v1336, 16
      %v1364 = vor.u32 %v1362, %v1360
      %v1366 = vshll.u32 %v1337, 16
      %v1368 = vrot.slane %v1366, 1
      %v1369 = vsel %vm311, %v1364, %v1368
      %v1370 = vshrl.u32 %v1337, 16
      %v1372 = vor.u32 %v1370, %v1368
      %v1374 = vshll.u32 %v1338, 16
      %v1376 = vrot.slane %v1374, 1
      %v1377 = vsel %vm311, %v1372, %v1376
      %v1378 = vshrl.u32 %v1338, 16
      %v1380 = vor.u32 %v1378, %v1376
      %v1382 = vshll.u32 %v1341, 16
      %v1384 = vrot.slane %v1382, 1
      %v1385 = vsel %vm311, %v1380, %v1384
      %1386 = vrot.lane.b32.xlu0 %v1353, 4
      %v1387 = vpop.permute.xlu0 %1386
      %1388 = vrot.lane.b32.xlu0 %v1361, 4
      %v1389 = vpop.permute.xlu0 %1388
      %1390 = vrot.lane.b32.xlu0 %v1369, 4
      %v1391 = vpop.permute.xlu0 %1390
      %1392 = vrot.lane.b32.xlu0 %v1377, 4
      %v1393 = vpop.permute.xlu0 %1392
      %1394 = vrot.lane.b32.xlu0 %v1385, 4
      %v1395 = vpop.permute.xlu0 %1394
      %v1397 = vunpack.c.l.b16 %v1303
      %v1398 = vpack.c.b16 %v1325, %v1397
      %v1399 = vrot.slane %v1398, 1
      %v1400 = vrot.slane %v1335, 1
      %v1401 = vsel %vm369, %v1399, %v1400
      %v1402 = vrot.slane %v1336, 1
      %v1403 = vsel %vm369, %v1400, %v1402
      %v1404 = vrot.slane %v1337, 1
      %v1405 = vsel %vm369, %v1402, %v1404
      %v1406 = vrot.slane %v1338, 1
      %v1407 = vsel %vm369, %v1404, %v1406
      %v1408 = vrot.slane %v1341, 1
      %v1409 = vsel %vm369, %v1406, %v1408
      %1410 = vrot.lane.b32.xlu0 %v1401, 8
      %v1411 = vpop.permute.xlu0 %1410
      %1412 = vrot.lane.b32.xlu0 %v1403, 8
      %v1413 = vpop.permute.xlu0 %1412
      %1414 = vrot.lane.b32.xlu0 %v1405, 8
      %v1415 = vpop.permute.xlu0 %1414
      %1416 = vrot.lane.b32.xlu0 %v1407, 8
      %v1417 = vpop.permute.xlu0 %1416
      %1418 = vrot.lane.b32.xlu0 %v1409, 8
      %v1419 = vpop.permute.xlu0 %1418
      %v1423 = vunpack.c.l.b16 %v1304
      %v1424 = vunpack.c.l.b16 %v1305
      %v1425 = vunpack.c.l.b16 %v1306
      %v1426 = vpack.c.b16 %v1326, %v1423
      %v1427 = vpack.c.b16 %v1328, %v1327
      %v1428 = vpack.c.b16 %v1330, %v1329
      %v1429 = vpack.c.b16 %v1332, %v1331
      %v1430 = vpack.c.b16 %v1424, %v1333
      %v1431 = vpack.c.b16 %v1425, %v1425
      %v1432 = vrot.slane %v1426, 1
      %v1433 = vrot.slane %v1427, 1
      %v1434 = vsel %vm369, %v1432, %v1433
      %v1435 = vrot.slane %v1428, 1
      %v1436 = vsel %vm369, %v1433, %v1435
      %v1437 = vrot.slane %v1429, 1
      %v1438 = vsel %vm369, %v1435, %v1437
      %v1439 = vrot.slane %v1430, 1
      %v1440 = vsel %vm369, %v1437, %v1439
      %v1441 = vrot.slane %v1431, 1
      %v1442 = vsel %vm369, %v1439, %v1441
      %1443 = vrot.lane.b32.xlu0 %v1434, 12
      %v1444 = vpop.permute.xlu0 %1443
      %1445 = vrot.lane.b32.xlu0 %v1436, 12
      %v1446 = vpop.permute.xlu0 %1445
      %1447 = vrot.lane.b32.xlu0 %v1438, 12
      %v1448 = vpop.permute.xlu0 %1447
      %1449 = vrot.lane.b32.xlu0 %v1440, 12
      %v1450 = vpop.permute.xlu0 %1449
      %1451 = vrot.lane.b32.xlu0 %v1442, 12
      %v1452 = vpop.permute.xlu0 %1451
      %v1454 = vunpack.c.l.b16 %v1307
      %v1455 = vpack.c.b16 %v1454, %v1454
      %v1457 = vshrl.u32 %v1426, 16
      %v1459 = vrot.slane %v1457, 1
      %v1460 = vshll.u32 %v1426, 16
      %v1462 = vrot.slane %v1460, 2
      %v1463 = vor.u32 %v1459, %v1462
      %v1465 = vshrl.u32 %v1427, 16
      %v1467 = vrot.slane %v1465, 1
      %v1468 = vshll.u32 %v1427, 16
      %v1470 = vrot.slane %v1468, 2
      %v1471 = vor.u32 %v1467, %v1470
      %v1472 = vsel %vm427, %v1463, %v1471
      %v1474 = vshrl.u32 %v1428, 16
      %v1476 = vrot.slane %v1474, 1
      %v1477 = vshll.u32 %v1428, 16
      %v1479 = vrot.slane %v1477, 2
      %v1480 = vor.u32 %v1476, %v1479
      %v1481 = vsel %vm427, %v1471, %v1480
      %v1483 = vshrl.u32 %v1429, 16
      %v1485 = vrot.slane %v1483, 1
      %v1486 = vshll.u32 %v1429, 16
      %v1488 = vrot.slane %v1486, 2
      %v1489 = vor.u32 %v1485, %v1488
      %v1490 = vsel %vm427, %v1480, %v1489
      %v1492 = vshrl.u32 %v1430, 16
      %v1494 = vrot.slane %v1492, 1
      %v1495 = vshll.u32 %v1430, 16
      %v1497 = vrot.slane %v1495, 2
      %v1498 = vor.u32 %v1494, %v1497
      %v1499 = vsel %vm427, %v1489, %v1498
      %v1501 = vshrl.u32 %v1455, 16
      %v1503 = vrot.slane %v1501, 1
      %v1504 = vshll.u32 %v1455, 16
      %v1506 = vrot.slane %v1504, 2
      %v1507 = vor.u32 %v1503, %v1506
      %v1508 = vsel %vm427, %v1498, %v1507
      %1509 = vrot.lane.b32.xlu0 %v1472, 16
      %v1510 = vpop.permute.xlu0 %1509
      %1511 = vrot.lane.b32.xlu0 %v1481, 16
      %v1512 = vpop.permute.xlu0 %1511
      %1513 = vrot.lane.b32.xlu0 %v1490, 16
      %v1514 = vpop.permute.xlu0 %1513
      %1515 = vrot.lane.b32.xlu0 %v1499, 16
      %v1516 = vpop.permute.xlu0 %1515
      %1517 = vrot.lane.b32.xlu0 %v1508, 16
      %v1518 = vpop.permute.xlu0 %1517
      %v1520 = vunpack.c.l.b16 %v1308
      %v1521 = vpack.c.b16 %v1326, %v1520
      %v1522 = vrot.slane %v1521, 2
      %v1523 = vrot.slane %v1427, 2
      %v1524 = vsel %vm494, %v1522, %v1523
      %v1525 = vrot.slane %v1428, 2
      %v1526 = vsel %vm494, %v1523, %v1525
      %v1527 = vrot.slane %v1429, 2
      %v1528 = vsel %vm494, %v1525, %v1527
      %v1529 = vrot.slane %v1430, 2
      %v1530 = vsel %vm494, %v1527, %v1529
      %v1531 = vrot.slane %v1455, 2
      %v1532 = vsel %vm494, %v1529, %v1531
      %1533 = vrot.lane.b32.xlu0 %v1524, 20
      %v1534 = vpop.permute.xlu0 %1533
      %1535 = vrot.lane.b32.xlu0 %v1526, 20
      %v1536 = vpop.permute.xlu0 %1535
      %1537 = vrot.lane.b32.xlu0 %v1528, 20
      %v1538 = vpop.permute.xlu0 %1537
      %1539 = vrot.lane.b32.xlu0 %v1530, 20
      %v1540 = vpop.permute.xlu0 %1539
      %1541 = vrot.lane.b32.xlu0 %v1532, 20
      %v1542 = vpop.permute.xlu0 %1541
      %v1546 = vunpack.c.l.b16 %v1309
      %v1547 = vunpack.c.l.b16 %v1310
      %v1548 = vunpack.c.l.b16 %v1311
      %v1549 = vpack.c.b16 %v1327, %v1546
      %v1550 = vpack.c.b16 %v1547, %v1424
      %v1551 = vpack.c.b16 %v1548, %v1548
      %v1552 = vrot.slane %v1549, 2
      %v1553 = vrot.slane %v1336, 2
      %v1554 = vsel %vm494, %v1552, %v1553
      %v1555 = vrot.slane %v1337, 2
      %v1556 = vsel %vm494, %v1553, %v1555
      %v1557 = vrot.slane %v1338, 2
      %v1558 = vsel %vm494, %v1555, %v1557
      %v1559 = vrot.slane %v1550, 2
      %v1560 = vsel %vm494, %v1557, %v1559
      %v1561 = vrot.slane %v1551, 2
      %v1562 = vsel %vm494, %v1559, %v1561
      %1563 = vrot.lane.b32.xlu0 %v1554, 24
      %v1564 = vpop.permute.xlu0 %1563
      %1565 = vrot.lane.b32.xlu0 %v1556, 24
      %v1566 = vpop.permute.xlu0 %1565
      %1567 = vrot.lane.b32.xlu0 %v1558, 24
      %v1568 = vpop.permute.xlu0 %1567
      %1569 = vrot.lane.b32.xlu0 %v1560, 24
      %v1570 = vpop.permute.xlu0 %1569
      %1571 = vrot.lane.b32.xlu0 %v1562, 24
      %v1572 = vpop.permute.xlu0 %1571
      %v1574 = vunpack.c.l.b16 %v1312
      %v1575 = vpack.c.b16 %v1574, %v1574
      %v1577 = vshrl.u32 %v1549, 16
      %v1579 = vrot.slane %v1577, 2
      %v1580 = vshll.u32 %v1549, 16
      %v1582 = vrot.slane %v1580, 3
      %v1583 = vor.u32 %v1579, %v1582
      %v1584 = vrot.slane %v1362, 2
      %v1585 = vrot.slane %v1358, 3
      %v1586 = vor.u32 %v1584, %v1585
      %v1587 = vsel %vm549, %v1583, %v1586
      %v1588 = vrot.slane %v1370, 2
      %v1589 = vrot.slane %v1366, 3
      %v1590 = vor.u32 %v1588, %v1589
      %v1591 = vsel %vm549, %v1586, %v1590
      %v1592 = vrot.slane %v1378, 2
      %v1593 = vrot.slane %v1374, 3
      %v1594 = vor.u32 %v1592, %v1593
      %v1595 = vsel %vm549, %v1590, %v1594
      %v1597 = vshrl.u32 %v1550, 16
      %v1599 = vrot.slane %v1597, 2
      %v1600 = vshll.u32 %v1550, 16
      %v1602 = vrot.slane %v1600, 3
      %v1603 = vor.u32 %v1599, %v1602
      %v1604 = vsel %vm549, %v1594, %v1603
      %v1606 = vshrl.u32 %v1575, 16
      %v1608 = vrot.slane %v1606, 2
      %v1609 = vshll.u32 %v1575, 16
      %v1611 = vrot.slane %v1609, 3
      %v1612 = vor.u32 %v1608, %v1611
      %v1613 = vsel %vm549, %v1603, %v1612
      %1614 = vrot.lane.b32.xlu0 %v1587, 28
      %v1615 = vpop.permute.xlu0 %1614
      %1616 = vrot.lane.b32.xlu0 %v1591, 28
      %v1617 = vpop.permute.xlu0 %1616
      %1618 = vrot.lane.b32.xlu0 %v1595, 28
      %v1619 = vpop.permute.xlu0 %1618
      %1620 = vrot.lane.b32.xlu0 %v1604, 28
      %v1621 = vpop.permute.xlu0 %1620
      %1622 = vrot.lane.b32.xlu0 %v1613, 28
      %v1623 = vpop.permute.xlu0 %1622
      %v1625 = vunpack.c.l.b16 %v1313
      %v1626 = vpack.c.b16 %v1327, %v1625
      %v1627 = vrot.slane %v1626, 3
      %v1628 = vrot.slane %v1336, 3
      %v1629 = vsel %vm601, %v1627, %v1628
      %v1630 = vrot.slane %v1337, 3
      %v1631 = vsel %vm601, %v1628, %v1630
      %v1632 = vrot.slane %v1338, 3
      %v1633 = vsel %vm601, %v1630, %v1632
      %v1634 = vrot.slane %v1550, 3
      %v1635 = vsel %vm601, %v1632, %v1634
      %v1636 = vrot.slane %v1575, 3
      %v1637 = vsel %vm601, %v1634, %v1636
      %1638 = vrot.lane.b32.xlu0 %v1629, 32
      %v1639 = vpop.permute.xlu0 %1638
      %1640 = vrot.lane.b32.xlu0 %v1631, 32
      %v1641 = vpop.permute.xlu0 %1640
      %1642 = vrot.lane.b32.xlu0 %v1633, 32
      %v1643 = vpop.permute.xlu0 %1642
      %1644 = vrot.lane.b32.xlu0 %v1635, 32
      %v1645 = vpop.permute.xlu0 %1644
      %1646 = vrot.lane.b32.xlu0 %v1637, 32
      %v1647 = vpop.permute.xlu0 %1646
      %v1649 = vsel %vm623, %v1334, %v1387
      %v1651 = vsel %vm623, %v1335, %v1389
      %v1653 = vsel %vm623, %v1336, %v1391
      %v1655 = vsel %vm623, %v1337, %v1393
      %v1657 = vsel %vm623, %v1338, %v1395
      %v1659 = vsel %vm634, %v1649, %v1411
      %v1661 = vsel %vm634, %v1651, %v1413
      %v1663 = vsel %vm634, %v1653, %v1415
      %v1665 = vsel %vm634, %v1655, %v1417
      %v1667 = vsel %vm634, %v1657, %v1419
      %v1669 = vsel %vm645, %v1659, %v1444
      %v1671 = vsel %vm645, %v1661, %v1446
      %v1673 = vsel %vm645, %v1663, %v1448
      %v1675 = vsel %vm645, %v1665, %v1450
      %v1677 = vsel %vm645, %v1667, %v1452
      %v1679 = vsel %vm656, %v1669, %v1510
      %v1681 = vsel %vm656, %v1671, %v1512
      %v1683 = vsel %vm656, %v1673, %v1514
      %v1685 = vsel %vm656, %v1675, %v1516
      %v1687 = vsel %vm656, %v1677, %v1518
      %v1689 = vsel %vm667, %v1679, %v1534
      %v1691 = vsel %vm667, %v1681, %v1536
      %v1693 = vsel %vm667, %v1683, %v1538
      %v1695 = vsel %vm667, %v1685, %v1540
      %v1697 = vsel %vm667, %v1687, %v1542
      %v1699 = vsel %vm678, %v1689, %v1564
      %v1701 = vsel %vm678, %v1691, %v1566
      %v1703 = vsel %vm678, %v1693, %v1568
      %v1705 = vsel %vm678, %v1695, %v1570
      %v1707 = vsel %vm678, %v1697, %v1572
      %v1709 = vsel %vm689, %v1699, %v1615
      %v1711 = vsel %vm689, %v1701, %v1617
      %v1713 = vsel %vm689, %v1703, %v1619
      %v1715 = vsel %vm689, %v1705, %v1621
      %v1717 = vsel %vm689, %v1707, %v1623
      %v1719 = vsel %vm700, %v1709, %v1639
      %v1721 = vsel %vm700, %v1711, %v1641
      %v1723 = vsel %vm700, %v1713, %v1643
      %v1725 = vsel %vm700, %v1715, %v1645
      %v1727 = vsel %vm700, %v1717, %v1647
      %s1728 = scalar_lea.vmem %s1, 40
      %v1729 = vld [vmem:[%s1728] sm:$0xf]
      %v1730 = vld [vmem:[%s1728 + $0x4] sm:$0xf]
      %v1731 = vld [vmem:[%s1728 + $0x8] sm:$0xf]
      %v1732 = vld [vmem:[%s1728 + $0xc] sm:$0xf]
      %v1733 = vld [vmem:[%s1728 + $0x10] sm:$0x3]
      %v1739 = vunpack.c.l.b16 %v1729
      %v1740 = vunpack.c.l.b16 %v1730
      %v1741 = vunpack.c.l.b16 %v1731
      %v1742 = vunpack.c.l.b16 %v1732
      %v1743 = vunpack.c.l.b16 %v1733
      %v1744 = vpack.c.b16 %v1740, %v1739
      %v1745 = vpack.c.b16 %v1742, %v1741
      %v1746 = vpack.c.b16 %v1743, %v1743
      %v1749 = vsel %vm1177, %v1719, 0
      %v1751 = vsel %vm1177, %v1721, 0
      %v1753 = vsel %vm1177, %v1723, 0
      %v1755 = vsel %vm1177, %v1725, 0
      %v1757 = vsel %vm1177, %v1727, 0
      %v1760 = vsel %vm1188, %v1746, 0
      %1762 = vmatpush.bf16.msra.mxu0 0
      %1763 = vmatpush.bf16.msra.mxu0 0
      %1764 = vmatpush.bf16.msra.mxu0 0
      %1765 = vmatpush.bf16.msra.mxu0 0
      %1766 = vmatpush.bf16.msra.mxu0 0
      %1767 = vmatpush.bf16.msra.mxu0 %v1760
      %1768 = vmatpush.bf16.msra.mxu0 %v1745
      %1769 = vmatpush.bf16.msra.mxu0 %v1744
      %1770 = vmatmul.bf16.gmra.mxu0 %v1749
      %v1771 = vpop.f32.mrf.mxu0
      %v1772 = vadd.f32 0.0, %v1771
      %v1773 = vpop.f32.mrf.mxu0
      %v1774 = vadd.f32 0.0, %v1773
      %1775 = vmatmul.bf16.gmra.mxu0 %v1751
      %v1776 = vpop.f32.mrf.mxu0
      %v1777 = vadd.f32 0.0, %v1776
      %v1778 = vpop.f32.mrf.mxu0
      %v1779 = vadd.f32 0.0, %v1778
      %1780 = vmatmul.bf16.gmra.mxu0 %v1753
      %v1781 = vpop.f32.mrf.mxu0
      %v1782 = vadd.f32 0.0, %v1781
      %v1783 = vpop.f32.mrf.mxu0
      %v1784 = vadd.f32 0.0, %v1783
      %1785 = vmatmul.bf16.gmra.mxu0 %v1755
      %v1786 = vpop.f32.mrf.mxu0
      %v1787 = vadd.f32 0.0, %v1786
      %v1788 = vpop.f32.mrf.mxu0
      %v1789 = vadd.f32 0.0, %v1788
      %1790 = vmatmul.bf16.gmra.mxu0 %v1757
      %v1791 = vpop.f32.mrf.mxu0
      %v1792 = vadd.f32 0.0, %v1791
      %v1793 = vpop.f32.mrf.mxu0
      %v1794 = vadd.f32 0.0, %v1793
      %1795 = vdwg.mxu0
      %v1796 = vadd.f32 %v1264, %v1772
      %v1797 = vadd.f32 %v1266, %v1774
      %v1798 = vadd.f32 %v1269, %v1777
      %v1799 = vadd.f32 %v1271, %v1779
      %v1800 = vadd.f32 %v1274, %v1782
      %v1801 = vadd.f32 %v1276, %v1784
      %v1802 = vadd.f32 %v1279, %v1787
      %v1803 = vadd.f32 %v1281, %v1789
      %v1804 = vadd.f32 %v1284, %v1792
      %v1805 = vadd.f32 %v1286, %v1794
      %1806 = vst [vmem:[%s242] sm:$0xff] %v1796
      %1807 = vst [vmem:[%s242 + $0x8] sm:$0xff] %v1797
      %1808 = vst [vmem:[%s242 + $0x10] sm:$0xff] %v1798
      %1809 = vst [vmem:[%s242 + $0x18] sm:$0xff] %v1799
      %1810 = vst [vmem:[%s242 + $0x20] sm:$0xff] %v1800
      %1811 = vst [vmem:[%s242 + $0x28] sm:$0xff] %v1801
      %1812 = vst [vmem:[%s242 + $0x30] sm:$0xff] %v1802
      %1813 = vst [vmem:[%s242 + $0x38] sm:$0xff] %v1803
      %1814 = vst [vmem:[%s242 + $0x40] sm:$0xff] %v1804
      %1815 = vst [vmem:[%s242 + $0x48] sm:$0xff] %v1805
      %v1816 = vlaneseq
      %v1817 = vshrl.u32 %v1816, 7
      %v1818 = vadd.s32 %v1817, 8
      %v1819 = vadd.s32 %v1817, 16
      %v1820 = vadd.s32 %v1817, 24
      %v1821 = vadd.s32 %v1817, 32
      %v1822 = vadd.s32 %v1817, 40
      %v1823 = vadd.s32 %v1817, 48
      %v1824 = vadd.s32 %v1817, 56
      %v1825 = vadd.s32 %v1817, 64
      %v1826 = vadd.s32 %v1817, 72
      %vm1827 = vcmp.lt.s32.totalorder %v1817, 0
      %v1828 = vsub.s32 0, %v1817
      %v1829 = vsel %vm1827, %v1828, %v1817
      %v1830 = vand.u32 %v1829, 65535
      %v1831 = vshrl.u32 %v1829, 16
      %v1833 = vmul.u32 %v1830, 52429
      %v1834 = vmul.u32 %v1830, 52428
      %v1835 = vmul.u32 %v1831, 52429
      %v1836 = vmul.u32 %v1831, 52428
      %v1837 = vshll.u32 %v1834, 16
      %v1838 = vshrl.u32 %v1834, 16
      %v1839 = vshll.u32 %v1835, 16
      %v1840 = vshrl.u32 %v1835, 16
      %vm1841 = vc.u32 %v1833, %v1837
      %v1842 = vsel %vm1841, 1, 0
      %v1843 = vadd.s32 %v1833, %v1837
      %v1844 = vadd.s32 %v1836, %v1842
      %vm1845 = vc.u32 %v1843, %v1839
      %v1846 = vsel %vm1845, 1, 0
      %v1847 = vadd.s32 %v1843, %v1839
      %v1848 = vadd.s32 %v1844, %v1846
      %v1849 = vadd.s32 %v1848, %v1838
      %v1850 = vadd.s32 %v1849, %v1840
      %v1851 = vshrl.u32 %v1850, 3
      %v1852 = vmul.u32 %v1851, 10
      %v1853 = vsub.s32 %v1829, %v1852
      %v1854 = vsub.s32 0, %v1853
      %v1855 = vsel %vm1827, %v1854, %v1853
      %vm1856 = vcmp.lt.s32.totalorder %v1818, 0
      %v1857 = vsub.s32 0, %v1818
      %v1858 = vsel %vm1856, %v1857, %v1818
      %v1859 = vand.u32 %v1858, 65535
      %v1860 = vshrl.u32 %v1858, 16
      %v1862 = vmul.u32 %v1859, 52429
      %v1863 = vmul.u32 %v1859, 52428
      %v1864 = vmul.u32 %v1860, 52429
      %v1865 = vmul.u32 %v1860, 52428
      %v1866 = vshll.u32 %v1863, 16
      %v1867 = vshrl.u32 %v1863, 16
      %v1868 = vshll.u32 %v1864, 16
      %v1869 = vshrl.u32 %v1864, 16
      %vm1870 = vc.u32 %v1862, %v1866
      %v1871 = vsel %vm1870, 1, 0
      %v1872 = vadd.s32 %v1862, %v1866
      %v1873 = vadd.s32 %v1865, %v1871
      %vm1874 = vc.u32 %v1872, %v1868
      %v1875 = vsel %vm1874, 1, 0
      %v1876 = vadd.s32 %v1872, %v1868
      %v1877 = vadd.s32 %v1873, %v1875
      %v1878 = vadd.s32 %v1877, %v1867
      %v1879 = vadd.s32 %v1878, %v1869
      %v1880 = vshrl.u32 %v1879, 3
      %v1881 = vmul.u32 %v1880, 10
      %v1882 = vsub.s32 %v1858, %v1881
      %v1883 = vsub.s32 0, %v1882
      %v1884 = vsel %vm1856, %v1883, %v1882
      %vm1885 = vcmp.lt.s32.totalorder %v1819, 0
      %v1886 = vsub.s32 0, %v1819
      %v1887 = vsel %vm1885, %v1886, %v1819
      %v1888 = vand.u32 %v1887, 65535
      %v1889 = vshrl.u32 %v1887, 16
      %v1891 = vmul.u32 %v1888, 52429
      %v1892 = vmul.u32 %v1888, 52428
      %v1893 = vmul.u32 %v1889, 52429
      %v1894 = vmul.u32 %v1889, 52428
      %v1895 = vshll.u32 %v1892, 16
      %v1896 = vshrl.u32 %v1892, 16
      %v1897 = vshll.u32 %v1893, 16
      %v1898 = vshrl.u32 %v1893, 16
      %vm1899 = vc.u32 %v1891, %v1895
      %v1900 = vsel %vm1899, 1, 0
      %v1901 = vadd.s32 %v1891, %v1895
      %v1902 = vadd.s32 %v1894, %v1900
      %vm1903 = vc.u32 %v1901, %v1897
      %v1904 = vsel %vm1903, 1, 0
      %v1905 = vadd.s32 %v1901, %v1897
      %v1906 = vadd.s32 %v1902, %v1904
      %v1907 = vadd.s32 %v1906, %v1896
      %v1908 = vadd.s32 %v1907, %v1898
      %v1909 = vshrl.u32 %v1908, 3
      %v1910 = vmul.u32 %v1909, 10
      %v1911 = vsub.s32 %v1887, %v1910
      %v1912 = vsub.s32 0, %v1911
      %v1913 = vsel %vm1885, %v1912, %v1911
      %vm1914 = vcmp.lt.s32.totalorder %v1820, 0
      %v1915 = vsub.s32 0, %v1820
      %v1916 = vsel %vm1914, %v1915, %v1820
      %v1917 = vand.u32 %v1916, 65535
      %v1918 = vshrl.u32 %v1916, 16
      %v1920 = vmul.u32 %v1917, 52429
      %v1921 = vmul.u32 %v1917, 52428
      %v1922 = vmul.u32 %v1918, 52429
      %v1923 = vmul.u32 %v1918, 52428
      %v1924 = vshll.u32 %v1921, 16
      %v1925 = vshrl.u32 %v1921, 16
      %v1926 = vshll.u32 %v1922, 16
      %v1927 = vshrl.u32 %v1922, 16
      %vm1928 = vc.u32 %v1920, %v1924
      %v1929 = vsel %vm1928, 1, 0
      %v1930 = vadd.s32 %v1920, %v1924
      %v1931 = vadd.s32 %v1923, %v1929
      %vm1932 = vc.u32 %v1930, %v1926
      %v1933 = vsel %vm1932, 1, 0
      %v1934 = vadd.s32 %v1930, %v1926
      %v1935 = vadd.s32 %v1931, %v1933
      %v1936 = vadd.s32 %v1935, %v1925
      %v1937 = vadd.s32 %v1936, %v1927
      %v1938 = vshrl.u32 %v1937, 3
      %v1939 = vmul.u32 %v1938, 10
      %v1940 = vsub.s32 %v1916, %v1939
      %v1941 = vsub.s32 0, %v1940
      %v1942 = vsel %vm1914, %v1941, %v1940
      %vm1943 = vcmp.lt.s32.totalorder %v1821, 0
      %v1944 = vsub.s32 0, %v1821
      %v1945 = vsel %vm1943, %v1944, %v1821
      %v1946 = vand.u32 %v1945, 65535
      %v1947 = vshrl.u32 %v1945, 16
      %v1949 = vmul.u32 %v1946, 52429
      %v1950 = vmul.u32 %v1946, 52428
      %v1951 = vmul.u32 %v1947, 52429
      %v1952 = vmul.u32 %v1947, 52428
      %v1953 = vshll.u32 %v1950, 16
      %v1954 = vshrl.u32 %v1950, 16
      %v1955 = vshll.u32 %v1951, 16
      %v1956 = vshrl.u32 %v1951, 16
      %vm1957 = vc.u32 %v1949, %v1953
      %v1958 = vsel %vm1957, 1, 0
      %v1959 = vadd.s32 %v1949, %v1953
      %v1960 = vadd.s32 %v1952, %v1958
      %vm1961 = vc.u32 %v1959, %v1955
      %v1962 = vsel %vm1961, 1, 0
      %v1963 = vadd.s32 %v1959, %v1955
      %v1964 = vadd.s32 %v1960, %v1962
      %v1965 = vadd.s32 %v1964, %v1954
      %v1966 = vadd.s32 %v1965, %v1956
      %v1967 = vshrl.u32 %v1966, 3
      %v1968 = vmul.u32 %v1967, 10
      %v1969 = vsub.s32 %v1945, %v1968
      %v1970 = vsub.s32 0, %v1969
      %v1971 = vsel %vm1943, %v1970, %v1969
      %vm1972 = vcmp.lt.s32.totalorder %v1822, 0
      %v1973 = vsub.s32 0, %v1822
      %v1974 = vsel %vm1972, %v1973, %v1822
      %v1975 = vand.u32 %v1974, 65535
      %v1976 = vshrl.u32 %v1974, 16
      %v1978 = vmul.u32 %v1975, 52429
      %v1979 = vmul.u32 %v1975, 52428
      %v1980 = vmul.u32 %v1976, 52429
      %v1981 = vmul.u32 %v1976, 52428
      %v1982 = vshll.u32 %v1979, 16
      %v1983 = vshrl.u32 %v1979, 16
      %v1984 = vshll.u32 %v1980, 16
      %v1985 = vshrl.u32 %v1980, 16
      %vm1986 = vc.u32 %v1978, %v1982
      %v1987 = vsel %vm1986, 1, 0
      %v1988 = vadd.s32 %v1978, %v1982
      %v1989 = vadd.s32 %v1981, %v1987
      %vm1990 = vc.u32 %v1988, %v1984
      %v1991 = vsel %vm1990, 1, 0
      %v1992 = vadd.s32 %v1988, %v1984
      %v1993 = vadd.s32 %v1989, %v1991
      %v1994 = vadd.s32 %v1993, %v1983
      %v1995 = vadd.s32 %v1994, %v1985
      %v1996 = vshrl.u32 %v1995, 3
      %v1997 = vmul.u32 %v1996, 10
      %v1998 = vsub.s32 %v1974, %v1997
      %v1999 = vsub.s32 0, %v1998
      %v2000 = vsel %vm1972, %v1999, %v1998
      %vm2001 = vcmp.lt.s32.totalorder %v1823, 0
      %v2002 = vsub.s32 0, %v1823
      %v2003 = vsel %vm2001, %v2002, %v1823
      %v2004 = vand.u32 %v2003, 65535
      %v2005 = vshrl.u32 %v2003, 16
      %v2007 = vmul.u32 %v2004, 52429
      %v2008 = vmul.u32 %v2004, 52428
      %v2009 = vmul.u32 %v2005, 52429
      %v2010 = vmul.u32 %v2005, 52428
      %v2011 = vshll.u32 %v2008, 16
      %v2012 = vshrl.u32 %v2008, 16
      %v2013 = vshll.u32 %v2009, 16
      %v2014 = vshrl.u32 %v2009, 16
      %vm2015 = vc.u32 %v2007, %v2011
      %v2016 = vsel %vm2015, 1, 0
      %v2017 = vadd.s32 %v2007, %v2011
      %v2018 = vadd.s32 %v2010, %v2016
      %vm2019 = vc.u32 %v2017, %v2013
      %v2020 = vsel %vm2019, 1, 0
      %v2021 = vadd.s32 %v2017, %v2013
      %v2022 = vadd.s32 %v2018, %v2020
      %v2023 = vadd.s32 %v2022, %v2012
      %v2024 = vadd.s32 %v2023, %v2014
      %v2025 = vshrl.u32 %v2024, 3
      %v2026 = vmul.u32 %v2025, 10
      %v2027 = vsub.s32 %v2003, %v2026
      %v2028 = vsub.s32 0, %v2027
      %v2029 = vsel %vm2001, %v2028, %v2027
      %vm2030 = vcmp.lt.s32.totalorder %v1824, 0
      %v2031 = vsub.s32 0, %v1824
      %v2032 = vsel %vm2030, %v2031, %v1824
      %v2033 = vand.u32 %v2032, 65535
      %v2034 = vshrl.u32 %v2032, 16
      %v2036 = vmul.u32 %v2033, 52429
      %v2037 = vmul.u32 %v2033, 52428
      %v2038 = vmul.u32 %v2034, 52429
      %v2039 = vmul.u32 %v2034, 52428
      %v2040 = vshll.u32 %v2037, 16
      %v2041 = vshrl.u32 %v2037, 16
      %v2042 = vshll.u32 %v2038, 16
      %v2043 = vshrl.u32 %v2038, 16
      %vm2044 = vc.u32 %v2036, %v2040
      %v2045 = vsel %vm2044, 1, 0
      %v2046 = vadd.s32 %v2036, %v2040
      %v2047 = vadd.s32 %v2039, %v2045
      %vm2048 = vc.u32 %v2046, %v2042
      %v2049 = vsel %vm2048, 1, 0
      %v2050 = vadd.s32 %v2046, %v2042
      %v2051 = vadd.s32 %v2047, %v2049
      %v2052 = vadd.s32 %v2051, %v2041
      %v2053 = vadd.s32 %v2052, %v2043
      %v2054 = vshrl.u32 %v2053, 3
      %v2055 = vmul.u32 %v2054, 10
      %v2056 = vsub.s32 %v2032, %v2055
      %v2057 = vsub.s32 0, %v2056
      %v2058 = vsel %vm2030, %v2057, %v2056
      %vm2059 = vcmp.lt.s32.totalorder %v1825, 0
      %v2060 = vsub.s32 0, %v1825
      %v2061 = vsel %vm2059, %v2060, %v1825
      %v2062 = vand.u32 %v2061, 65535
      %v2063 = vshrl.u32 %v2061, 16
      %v2065 = vmul.u32 %v2062, 52429
      %v2066 = vmul.u32 %v2062, 52428
      %v2067 = vmul.u32 %v2063, 52429
      %v2068 = vmul.u32 %v2063, 52428
      %v2069 = vshll.u32 %v2066, 16
      %v2070 = vshrl.u32 %v2066, 16
      %v2071 = vshll.u32 %v2067, 16
      %v2072 = vshrl.u32 %v2067, 16
      %vm2073 = vc.u32 %v2065, %v2069
      %v2074 = vsel %vm2073, 1, 0
      %v2075 = vadd.s32 %v2065, %v2069
      %v2076 = vadd.s32 %v2068, %v2074
      %vm2077 = vc.u32 %v2075, %v2071
      %v2078 = vsel %vm2077, 1, 0
      %v2079 = vadd.s32 %v2075, %v2071
      %v2080 = vadd.s32 %v2076, %v2078
      %v2081 = vadd.s32 %v2080, %v2070
      %v2082 = vadd.s32 %v2081, %v2072
      %v2083 = vshrl.u32 %v2082, 3
      %v2084 = vmul.u32 %v2083, 10
      %v2085 = vsub.s32 %v2061, %v2084
      %v2086 = vsub.s32 0, %v2085
      %v2087 = vsel %vm2059, %v2086, %v2085
      %vm2088 = vcmp.lt.s32.totalorder %v1826, 0
      %v2089 = vsub.s32 0, %v1826
      %v2090 = vsel %vm2088, %v2089, %v1826
      %v2091 = vand.u32 %v2090, 65535
      %v2092 = vshrl.u32 %v2090, 16
      %v2094 = vmul.u32 %v2091, 52429
      %v2095 = vmul.u32 %v2091, 52428
      %v2096 = vmul.u32 %v2092, 52429
      %v2097 = vmul.u32 %v2092, 52428
      %v2098 = vshll.u32 %v2095, 16
      %v2099 = vshrl.u32 %v2095, 16
      %v2100 = vshll.u32 %v2096, 16
      %v2101 = vshrl.u32 %v2096, 16
      %vm2102 = vc.u32 %v2094, %v2098
      %v2103 = vsel %vm2102, 1, 0
      %v2104 = vadd.s32 %v2094, %v2098
      %v2105 = vadd.s32 %v2097, %v2103
      %vm2106 = vc.u32 %v2104, %v2100
      %v2107 = vsel %vm2106, 1, 0
      %v2108 = vadd.s32 %v2104, %v2100
      %v2109 = vadd.s32 %v2105, %v2107
      %v2110 = vadd.s32 %v2109, %v2099
      %v2111 = vadd.s32 %v2110, %v2101
      %v2112 = vshrl.u32 %v2111, 3
      %v2113 = vmul.u32 %v2112, 10
      %v2114 = vsub.s32 %v2090, %v2113
      %v2115 = vsub.s32 0, %v2114
      %v2116 = vsel %vm2088, %v2115, %v2114
      %vm2117 = vcmp.ne.s32.totalorder %v1855, 0
      %vm2118 = vcmp.ne.s32.totalorder %v1884, 0
      %vm2119 = vcmp.ne.s32.totalorder %v1913, 0
      %vm2120 = vcmp.ne.s32.totalorder %v1942, 0
      %vm2121 = vcmp.ne.s32.totalorder %v1971, 0
      %vm2122 = vcmp.ne.s32.totalorder %v2000, 0
      %vm2123 = vcmp.ne.s32.totalorder %v2029, 0
      %vm2124 = vcmp.ne.s32.totalorder %v2058, 0
      %vm2125 = vcmp.ne.s32.totalorder %v2087, 0
      %vm2126 = vcmp.ne.s32.totalorder %v2116, 0
      %vm2127 = vcmp.lt.s32.totalorder %v1855, 0
      %vm2128 = vcmp.lt.s32.totalorder %v1884, 0
      %vm2129 = vcmp.lt.s32.totalorder %v1913, 0
      %vm2130 = vcmp.lt.s32.totalorder %v1942, 0
      %vm2131 = vcmp.lt.s32.totalorder %v1971, 0
      %vm2132 = vcmp.lt.s32.totalorder %v2000, 0
      %vm2133 = vcmp.lt.s32.totalorder %v2029, 0
      %vm2134 = vcmp.lt.s32.totalorder %v2058, 0
      %vm2135 = vcmp.lt.s32.totalorder %v2087, 0
      %vm2136 = vcmp.lt.s32.totalorder %v2116, 0
      %vm2137 = vmand %vm2127, %vm2117
      %vm2138 = vmand %vm2128, %vm2118
      %vm2139 = vmand %vm2129, %vm2119
      %vm2140 = vmand %vm2130, %vm2120
      %vm2141 = vmand %vm2131, %vm2121
      %vm2142 = vmand %vm2132, %vm2122
      %vm2143 = vmand %vm2133, %vm2123
      %vm2144 = vmand %vm2134, %vm2124
      %vm2145 = vmand %vm2135, %vm2125
      %vm2146 = vmand %vm2136, %vm2126
      %v2147 = vadd.s32 %v1855, 10
      %v2148 = vadd.s32 %v1884, 10
      %v2149 = vadd.s32 %v1913, 10
      %v2150 = vadd.s32 %v1942, 10
      %v2151 = vadd.s32 %v1971, 10
      %v2152 = vadd.s32 %v2000, 10
      %v2153 = vadd.s32 %v2029, 10
      %v2154 = vadd.s32 %v2058, 10
      %v2155 = vadd.s32 %v2087, 10
      %v2156 = vadd.s32 %v2116, 10
      %v2157 = vsel %vm2137, %v2147, %v1855
      %v2158 = vsel %vm2138, %v2148, %v1884
      %v2159 = vsel %vm2139, %v2149, %v1913
      %v2160 = vsel %vm2140, %v2150, %v1942
      %v2161 = vsel %vm2141, %v2151, %v1971
      %v2162 = vsel %vm2142, %v2152, %v2000
      %v2163 = vsel %vm2143, %v2153, %v2029
      %v2164 = vsel %vm2144, %v2154, %v2058
      %v2165 = vsel %vm2145, %v2155, %v2087
      %v2166 = vsel %vm2146, %v2156, %v2116
      %vm2167 = vcmp.lt.s32.totalorder %v2157, 8
      %vm2168 = vcmp.lt.s32.totalorder %v2158, 8
      %vm2169 = vcmp.lt.s32.totalorder %v2159, 8
      %vm2170 = vcmp.lt.s32.totalorder %v2160, 8
      %vm2171 = vcmp.lt.s32.totalorder %v2161, 8
      %vm2172 = vcmp.lt.s32.totalorder %v2162, 8
      %vm2173 = vcmp.lt.s32.totalorder %v2163, 8
      %vm2174 = vcmp.lt.s32.totalorder %v2164, 8
      %vm2175 = vcmp.lt.s32.totalorder %v2165, 8
      %vm2176 = vcmp.lt.s32.totalorder %v2166, 8
      %v2177 = vsel %vm2167, 1, 0
      %v2178 = vsel %vm2168, 1, 0
      %v2179 = vsel %vm2169, 1, 0
      %v2180 = vsel %vm2170, 1, 0
      %v2181 = vsel %vm2171, 1, 0
      %v2182 = vsel %vm2172, 1, 0
      %v2183 = vsel %vm2173, 1, 0
      %v2184 = vsel %vm2174, 1, 0
      %v2185 = vsel %vm2175, 1, 0
      %v2186 = vsel %vm2176, 1, 0
      %v2187 = vcvt.s32.f32 %v2177
      %v2188 = vcvt.s32.f32 %v2178
      %v2189 = vcvt.s32.f32 %v2179
      %v2190 = vcvt.s32.f32 %v2180
      %v2191 = vcvt.s32.f32 %v2181
      %v2192 = vcvt.s32.f32 %v2182
      %v2193 = vcvt.s32.f32 %v2183
      %v2194 = vcvt.s32.f32 %v2184
      %v2195 = vcvt.s32.f32 %v2185
      %v2196 = vcvt.s32.f32 %v2186
      %v2197 = vmul.f32 %v1796, %v2187
      %v2198 = vmul.f32 %v1797, %v2188
      %v2199 = vmul.f32 %v1798, %v2189
      %v2200 = vmul.f32 %v1799, %v2190
      %v2201 = vmul.f32 %v1800, %v2191
      %v2202 = vmul.f32 %v1801, %v2192
      %v2203 = vmul.f32 %v1802, %v2193
      %v2204 = vmul.f32 %v1803, %v2194
      %v2205 = vmul.f32 %v1804, %v2195
      %v2206 = vmul.f32 %v1805, %v2196
      %v2207 = vadd.f32 %v2197, %v2198
      %v2208 = vadd.f32 %v2207, %v2199
      %v2209 = vadd.f32 %v2208, %v2200
      %v2210 = vadd.f32 %v2209, %v2201
      %v2211 = vadd.f32 %v2210, %v2202
      %v2212 = vadd.f32 %v2211, %v2203
      %v2213 = vadd.f32 %v2212, %v2204
      %v2214 = vadd.f32 %v2213, %v2205
      %v2215 = vadd.f32 %v2214, %v2206
      %v2216 = vrot.slane %v2215, 4
      %v2217 = vadd.f32 %v2215, %v2216
      %v2218 = vrot.slane %v2217, 2
      %v2219 = vadd.f32 %v2217, %v2218
      %v2220 = vrot.slane %v2219, 1
      %v2221 = vadd.f32 %v2219, %v2220
      %2222 = vst [vmem:[%s249] sm:$0x1] %v2221
      %v2223 = vmul.f32 %v2197, %v1796
      %v2224 = vmul.f32 %v2198, %v1797
      %v2225 = vmul.f32 %v2199, %v1798
      %v2226 = vmul.f32 %v2200, %v1799
      %v2227 = vmul.f32 %v2201, %v1800
      %v2228 = vmul.f32 %v2202, %v1801
      %v2229 = vmul.f32 %v2203, %v1802
      %v2230 = vmul.f32 %v2204, %v1803
      %v2231 = vmul.f32 %v2205, %v1804
      %v2232 = vmul.f32 %v2206, %v1805
      %v2233 = vadd.f32 %v2223, %v2224
      %v2234 = vadd.f32 %v2233, %v2225
      %v2235 = vadd.f32 %v2234, %v2226
      %v2236 = vadd.f32 %v2235, %v2227
      %v2237 = vadd.f32 %v2236, %v2228
      %v2238 = vadd.f32 %v2237, %v2229
      %v2239 = vadd.f32 %v2238, %v2230
      %v2240 = vadd.f32 %v2239, %v2231
      %v2241 = vadd.f32 %v2240, %v2232
      %v2242 = vrot.slane %v2241, 4
      %v2243 = vadd.f32 %v2241, %v2242
      %v2244 = vrot.slane %v2243, 2
      %v2245 = vadd.f32 %v2243, %v2244
      %v2246 = vrot.slane %v2245, 1
      %v2247 = vadd.f32 %v2245, %v2246
      %2248 = vst [vmem:[%s256] sm:$0x1] %v2247
      %p2249 = scmp.lt.s32.totalorder %s20, 1
      %s2250 = scalar_select %p2249, %s20, 1
      %p2251 = scmp.lt.s32.totalorder %s21, 3
      %s2252 = scalar_select %p2251, %s21, 3
      %s2253 = smul.addr %s2252, 10
      %s2254 = smul.addr %s2250, 40
      %s2255 = sadd.s32 %s2253, %s2254
      %s2256 = smul.addr %s2255, 8
      %s2257 = scalar_lea.vmem %s2, %s2256
      %p2258 = scmp.lt.s32.totalorder %s20, 1
      %s2259 = scalar_select %p2258, %s20, 1
      %p2260 = scmp.lt.s32.totalorder %s21, 3
      %s2261 = scalar_select %p2260, %s21, 3
      %s2262 = smul.addr %s2259, 4
      %s2263 = sadd.s32 %s2261, %s2262
      %s2264 = scalar_lea.vmem %s3, %s2263
      %p2265 = scmp.lt.s32.totalorder %s20, 1
      %s2266 = scalar_select %p2265, %s20, 1
      %p2267 = scmp.lt.s32.totalorder %s21, 3
      %s2268 = scalar_select %p2267, %s21, 3
      %s2269 = smul.addr %s2266, 4
      %s2270 = sadd.s32 %s2268, %s2269
      %s2271 = scalar_lea.vmem %s4, %s2270
      // Predicated region
      $region29: #{unit3d_forward.2} parent=27 // pred_check
        %p2272 = pneg %p95
      $region30: #{unit3d_forward.2} parent=27 // pred_check_branch
        %2274 = sbr.rel (%p2272) target = $region32
      $region31: #{unit3d_forward.2} parent=27 // pred_region
        _
      $region32: #{unit3d_forward.2} parent=27 // pred_fallthru
        _
      // Predicated region
      $region33: #{unit3d_forward.2} parent=27 // pred_check
        %p2275 = pneg %p123
      $region34: #{unit3d_forward.2} parent=27 // pred_check_branch
        %2277 = sbr.rel (%p2275) target = $region36
      $region35: #{unit3d_forward.2} parent=27 // pred_region
        _
      $region36: #{unit3d_forward.2} parent=27 // pred_fallthru
        _
      // Predicated region
      $region37: #{unit3d_forward.2} parent=27 // pred_check
        %p2278 = pneg %p151
      $region38: #{unit3d_forward.2} parent=27 // pred_check_branch
        %2280 = sbr.rel (%p2278) target = $region40
      $region39: #{unit3d_forward.2} parent=27 // pred_region
        _
      $region40: #{unit3d_forward.2} parent=27 // pred_fallthru
        _
    $region28: #{unit3d_forward.2} parent=5 // pred_fallthru
      _
    %p2281 = scmp.le.s32.totalorder 2, %s11
    // Predicated region
    $region41: #{unit3d_forward.2} parent=5 // pred_check
      %p2282 = pneg %p2281
    $region42: #{unit3d_forward.2} parent=5 // pred_check_branch
      %2284 = sbr.rel (%p2282) target = $region44
    $region43: #{unit3d_forward.2} parent=5 // pred_region
      %s2285 = ssub.s32 %s11, 2
      // Predicated region
      $region45: #{unit3d_forward.2} parent=43 // pred_check
        %p2286 = pneg %p101
      $region46: #{unit3d_forward.2} parent=43 // pred_check_branch
        %2288 = sbr.rel (%p2286) target = $region48
      $region47: #{unit3d_forward.2} parent=43 // pred_region
        %p2289 = scmp.lt.s32.totalorder %s22, 1
        %s2290 = scalar_select %p2289, %s22, 1
        %p2291 = scmp.lt.s32.totalorder %s23, 3
        %s2292 = scalar_select %p2291, %s23, 3
        %s2293 = smul.addr %s2292, 10
        %s2294 = smul.addr %s2290, 40
        %s2295 = sadd.s32 %s2293, %s2294
        %s2296 = smul.addr %s2295, 8
        %s2297 = scalar_lea.vmem %s2, %s2296
      $region48: #{unit3d_forward.2} parent=43 // pred_fallthru
        _
      // Predicated region
      $region49: #{unit3d_forward.2} parent=43 // pred_check
        %p2298 = pneg %p129
      $region50: #{unit3d_forward.2} parent=43 // pred_check_branch
        %2300 = sbr.rel (%p2298) target = $region52
      $region51: #{unit3d_forward.2} parent=43 // pred_region
        %p2301 = scmp.lt.s32.totalorder %s22, 1
        %s2302 = scalar_select %p2301, %s22, 1
        %p2303 = scmp.lt.s32.totalorder %s23, 3
        %s2304 = scalar_select %p2303, %s23, 3
        %s2305 = smul.addr %s2302, 4
        %s2306 = sadd.s32 %s2304, %s2305
        %s2307 = scalar_lea.vmem %s3, %s2306
      $region52: #{unit3d_forward.2} parent=43 // pred_fallthru
        _
      // Predicated region
      $region53: #{unit3d_forward.2} parent=43 // pred_check
        %p2308 = pneg %p157
      $region54: #{unit3d_forward.2} parent=43 // pred_check_branch
        %2310 = sbr.rel (%p2308) target = $region56
      $region55: #{unit3d_forward.2} parent=43 // pred_region
        %p2311 = scmp.lt.s32.totalorder %s22, 1
        %s2312 = scalar_select %p2311, %s22, 1
        %p2313 = scmp.lt.s32.totalorder %s23, 3
        %s2314 = scalar_select %p2313, %s23, 3
        %s2315 = smul.addr %s2312, 4
        %s2316 = sadd.s32 %s2314, %s2315
        %s2317 = scalar_lea.vmem %s4, %s2316
      $region56: #{unit3d_forward.2} parent=43 // pred_fallthru
        _
    $region44: #{unit3d_forward.2} parent=5 // pred_fallthru
      _
  $region6: #{unit3d_forward.2} parent=0 // loop_footer
    %s15 = sadd.s32 1, %s11
  $region7: #{unit3d_forward.2} parent=0 // loop_footer_branch
    %10 = sbr.rel target = $region3
  $region8: #{unit3d_forward.2} parent=0 // loop_exit
    _

</llo_original>
